<compile_context>
chip_gen: v5e
topology: v5e:2x2
jax: 0.10.0
libtpu: 0.0.40
codegen_flags: <defaults>
</compile_context>

<pallas_src>
import jax
import jax.numpy as jnp
from jax import lax
from jax.experimental import pallas as pl
from jax.experimental.pallas import tpu as pltpu
import numpy as np


def _lstm_weightdrop_kernel(x_ref, wih_ref, whh_ref, b_ref,
                            out_ref, h_scr, c_scr, gates_scr):
    """One grid step processes T_CHUNK timesteps.

    x_ref:      (T_CHUNK*B, I)    input chunk, rows are (t, b) flattened
    wih_ref:    (I, 4Hp)          input->hidden weight (pre-transposed, gate
                                  order [i,f,o,g]), resident, single-buffered
    whh_ref:    (Hp, 4Hp)         weight-dropped hidden->hidden weight,
                                  resident, single-buffered
    b_ref:      (1, 4Hp)          bias_ih + bias_hh (f32), resident
    out_ref:    (T_CHUNK*B, Hp)   hidden states for this chunk
    h_scr/c_scr:(B, Hp)           recurrent state, persists across grid steps
    gates_scr:  (T_CHUNK*B, 4Hp)  precomputed input projection + bias (f32)
    """
    B, Hp = h_scr.shape
    t_chunk = x_ref.shape[0] // B
    H3 = 3 * Hp
    mm_dtype = whh_ref.dtype

    @pl.when(pl.program_id(0) == 0)
    def _init():
        h_scr[...] = jnp.zeros_like(h_scr)
        c_scr[...] = jnp.zeros_like(c_scr)

    # Hoisted input projection: one large GEMM (+ bias) for the whole chunk.
    # Removes the x-projection and bias broadcast from the serial h-dependence
    # chain; the per-step body is only the small recurrent matmul plus gate
    # elementwise/EUP work.
    gates_scr[...] = (
        jnp.dot(x_ref[...], wih_ref[...], preferred_element_type=jnp.float32)
        + b_ref[...])

    def step(t, carry):
        off = pl.multiple_of(t * B, B)
        pre = gates_scr[pl.ds(off, B), :]                       # (B, 4Hp) f32
        gates = pre + jnp.dot(h_scr[...].astype(mm_dtype), whh_ref[...],
                              preferred_element_type=jnp.float32)
        # Gate columns were regrouped to [i, f, o, g]:
        # one sigmoid over the first 3Hp lanes, one tanh over the last Hp.
        sig = jax.nn.sigmoid(gates[:, :H3])
        g_g = jnp.tanh(gates[:, H3:])
        i_g = sig[:, 0 * Hp:1 * Hp]
        f_g = sig[:, 1 * Hp:2 * Hp]
        o_g = sig[:, 2 * Hp:3 * Hp]
        c_new = f_g * c_scr[...] + i_g * g_g
        h_new = o_g * jnp.tanh(c_new)
        c_scr[...] = c_new
        h_scr[...] = h_new
        out_ref[pl.ds(off, B), :] = h_new.astype(out_ref.dtype)
        return carry

    # Bound vreg pressure: each unrolled step keeps a (B,4Hp) gate set plus
    # temporaries live; shrink the unroll factor as 4Hp grows.
    lanes_4h = (4 * Hp) // 128
    if lanes_4h <= 4:
        unroll = 8
    elif lanes_4h <= 8:
        unroll = 4
    else:
        unroll = 2
    unroll = max(1, min(unroll, t_chunk))
    lax.fori_loop(0, t_chunk, step, 0, unroll=unroll)


def weight_drop_lstm_forward(x, w_ih, w_hh_raw, b_ih, b_hh, *,
                             p=0.1, training=False, dropout_key=None,
                             t_chunk=None, matmul_dtype=jnp.bfloat16):
    """Forward pass of WeightDrop(nn.LSTM(I, H), [('weight_hh_l0', p)]).

    x: (T, B, I); w_ih: (4H, I); w_hh_raw: (4H, H); b_ih/b_hh: (4H,)
    Returns hidden states (T, B, H), float32.
    """
    T, B, I = x.shape
    H4, H = w_hh_raw.shape
    assert H4 == 4 * H

    # --- WeightDrop._setweights(): F.dropout on the raw recurrent weight. ---
    # Applied wrapper-side (trivial XLA elementwise) so the kernel holds a
    # single copy of the recurrent weight.
    if training:
        keep = jax.random.bernoulli(dropout_key, 1.0 - p,
                                    w_hh_raw.shape).astype(jnp.float32)
        w_hh_eff = w_hh_raw.astype(jnp.float32) * keep / (1.0 - p)
    else:
        w_hh_eff = w_hh_raw.astype(jnp.float32)   # training=False => identity

    # --- Gate regrouping [i,f,g,o] -> [i,f,o,g] + hidden-dim padding --------
    Hp = max(128, ((H + 127) // 128) * 128)
    pad_h = Hp - H

    def regroup_pad(m, pad_last=False):
        blocks = list(jnp.split(m, 4, axis=0))                 # i, f, g, o
        blocks = [blocks[0], blocks[1], blocks[3], blocks[2]]  # i, f, o, g
        if pad_h:
            spec = [(0, pad_h)] + [(0, 0)] * (m.ndim - 1)
            blocks = [jnp.pad(b, spec) for b in blocks]
        out = jnp.concatenate(blocks, axis=0)
        if pad_last and pad_h:
            out = jnp.pad(out, [(0, 0)] * (m.ndim - 1) + [(0, pad_h)])
        return out

    w_ih_g = regroup_pad(w_ih.astype(jnp.float32))                 # (4Hp, I)
    w_hh_g = regroup_pad(w_hh_eff, pad_last=True)                  # (4Hp, Hp)
    b_g = regroup_pad((b_ih + b_hh).astype(jnp.float32))           # (4Hp,)

    # MXU operands in matmul_dtype (bf16 by default); accumulation, h/c,
    # gates and all elementwise math stay f32.
    w_ih_t = jnp.transpose(w_ih_g).astype(matmul_dtype)            # (I, 4Hp)
    w_hh_t = jnp.transpose(w_hh_g).astype(matmul_dtype)            # (Hp, 4Hp)
    b = b_g.reshape(1, 4 * Hp)                                     # (1, 4Hp)

    # --- Per-generation VMEM budget and time-chunk sizing -------------------
    try:
        vmem_cap = int(pltpu.get_tpu_info().vmem_capacity_bytes)
    except Exception:
        vmem_cap = 64 * 1024 * 1024          # conservative fallback (v7x size)
    vmem_limit = min(int(vmem_cap * 0.75), vmem_cap - (8 << 20))

    mm_bytes = jnp.dtype(matmul_dtype).itemsize
    resident = (w_ih_t.size + w_hh_t.size) * mm_bytes + b.size * 4
    state = 2 * B * Hp * 4
    # per-timestep chunk bytes: double-buffered x (matmul dtype),
    # double-buffered out (f32), plus the f32 gates scratch.
    per_t = B * (2 * I * mm_bytes + 2 * Hp * 4 + 4 * Hp * 4)
    if t_chunk is None:
        budget = vmem_limit - resident - state - (4 << 20)
        t_chunk = int(max(1, min(T, budget // per_t, 256)))
    n_chunks = pl.cdiv(T, t_chunk)
    T_pad = n_chunks * t_chunk

    x_p = x if T_pad == T else jnp.pad(x, ((0, T_pad - T), (0, 0), (0, 0)))
    # Flatten time*batch so the input projection is one big GEMM and the
    # kernel only ever does 2-D matmuls.
    x2d = x_p.reshape(T_pad * B, I).astype(matmul_dtype)           # (T*B, I)

    flops = 2 * T_pad * B * (I + Hp) * 4 * Hp
    transcendentals = 5 * T_pad * B * Hp       # 3 sigmoid + tanh(g) + tanh(c)
    bytes_accessed = (x2d.size * mm_bytes + T_pad * B * Hp * 4 + resident)

    out2d = pl.pallas_call(
        _lstm_weightdrop_kernel,
        out_shape=jax.ShapeDtypeStruct((T_pad * B, Hp), jnp.float32),
        grid=(n_chunks,),
        in_specs=[
            pl.BlockSpec((t_chunk * B, I), lambda t: (t, 0)),      # streamed x
            pl.BlockSpec((I, 4 * Hp), lambda t: (0, 0),
                         pipeline_mode=pl.Buffered(1)),            # resident W_ih^T
            pl.BlockSpec((Hp, 4 * Hp), lambda t: (0, 0),
                         pipeline_mode=pl.Buffered(1)),            # resident dropped W_hh^T
            pl.BlockSpec((1, 4 * Hp), lambda t: (0, 0),
                         pipeline_mode=pl.Buffered(1)),            # resident bias
        ],
        out_specs=pl.BlockSpec((t_chunk * B, Hp), lambda t: (t, 0)),
        scratch_shapes=[
            pltpu.VMEM((B, Hp), jnp.float32),                      # h state
            pltpu.VMEM((B, Hp), jnp.float32),                      # c state
            pltpu.VMEM((t_chunk * B, 4 * Hp), jnp.float32),        # input proj + bias
        ],
        compiler_params=pltpu.CompilerParams(
            dimension_semantics=("arbitrary",),                    # carried h/c
            vmem_limit_bytes=vmem_limit),
        cost_estimate=pl.CostEstimate(
            flops=flops, transcendentals=transcendentals,
            bytes_accessed=bytes_accessed),
    )(x2d, w_ih_t, w_hh_t, b)

    return out2d.reshape(T_pad, B, Hp)[:T, :, :H]


def _ref_lstm(x, w_ih, w_hh_eff, b_ih, b_hh):
    """Pure-JAX reference LSTM (PyTorch gate order i,f,g,o)."""
    T, B, _ = x.shape
    H = w_hh_eff.shape[1]
    h = jnp.zeros((B, H), jnp.float32)
    c = jnp.zeros((B, H), jnp.float32)
    outs = []
    for t in range(T):
        gates = x[t] @ w_ih.T + h @ w_hh_eff.T + b_ih + b_hh
        i = jax.nn.sigmoid(gates[:, :H])
        f = jax.nn.sigmoid(gates[:, H:2 * H])
        g = jnp.tanh(gates[:, 2 * H:3 * H])
        o = jax.nn.sigmoid(gates[:, 3 * H:4 * H])
        c = f * c + i * g
        h = o * jnp.tanh(c)
        outs.append(h)
    return jnp.stack(outs)


if __name__ == "__main__":
    T, B, I, H = 16, 8, 32, 32          # seq, batch, input, hidden

    key = jax.random.PRNGKey(0)
    kx, kwi, kwh, kbi, kbh, kdrop = jax.random.split(key, 6)

    # Deterministic parameter init, PyTorch-style uniform(-1/sqrt(H), 1/sqrt(H)).
    s = 1.0 / np.sqrt(H)
    x = jax.random.normal(kx, (T, B, I), jnp.float32)
    w_ih = jax.random.uniform(kwi, (4 * H, I), jnp.float32, -s, s)
    w_hh_raw = jax.random.uniform(kwh, (4 * H, H), jnp.float32, -s, s)
    b_ih = jax.random.uniform(kbi, (4 * H,), jnp.float32, -s, s)
    b_hh = jax.random.uniform(kbh, (4 * H,), jnp.float32, -s, s)

    # --- eval mode (F.dropout with training=False is identity), f32 MXU path.
    out_eval = weight_drop_lstm_forward(x, w_ih, w_hh_raw, b_ih, b_hh,
                                        p=0.1, training=False, t_chunk=4,
                                        matmul_dtype=jnp.float32)
    jax.block_until_ready(out_eval)
    ref_eval = _ref_lstm(x, w_ih, w_hh_raw, b_ih, b_hh)
    np.testing.assert_allclose(np.asarray(out_eval), np.asarray(ref_eval),
                               rtol=1e-5, atol=1e-5)

    # --- training mode (recurrent weight dropped with p=0.1), bf16 MXU path.
    out_train = weight_drop_lstm_forward(x, w_ih, w_hh_raw, b_ih, b_hh,
                                         p=0.1, training=True,
                                         dropout_key=kdrop, t_chunk=4)
    jax.block_until_ready(out_train)
    keep = jax.random.bernoulli(kdrop, 0.9, w_hh_raw.shape).astype(jnp.float32)
    w_hh_dropped = w_hh_raw * keep / 0.9
    ref_train = _ref_lstm(x, w_ih, w_hh_dropped, b_ih, b_hh)
    # bf16 MXU operands (f32 accumulation) => loose tolerance for this check.
    np.testing.assert_allclose(np.asarray(out_train), np.asarray(ref_train),
                               rtol=0, atol=4e-2)

    print("KERNEL_OK")
</pallas_src>

<mosaic_0001>
module attributes {stable_mosaic.version = 11 : i64} {
  func.func @_lstm_weightdrop_kernel(%arg0: i32, %arg1: memref<32x32xf32, #tpu.memory_space<vmem>>, %arg2: memref<32x512xf32, #tpu.memory_space<vmem>>, %arg3: memref<128x512xf32, #tpu.memory_space<vmem>>, %arg4: memref<1x512xf32, #tpu.memory_space<vmem>>, %arg5: memref<32x128xf32, #tpu.memory_space<vmem>>, %arg6: memref<8x128xf32, #tpu.memory_space<vmem>>, %arg7: memref<8x128xf32, #tpu.memory_space<vmem>>, %arg8: memref<32x512xf32, #tpu.memory_space<vmem>>) attributes {dimension_semantics = [#tpu.dimension_semantics<arbitrary>], iteration_bounds = array<i64: 4>, scalar_prefetch = 0 : i64, scratch_operands = 3 : i64, tpu.core_type = #tpu.core_type<tc>, window_params = [{transform_indices = @transform_0, window_bounds = array<i64: 32, 32>}, {pipeline_mode = #tpu.pipeline_mode<synchronous>, transform_indices = @transform_1, window_bounds = array<i64: 32, 512>}, {pipeline_mode = #tpu.pipeline_mode<synchronous>, transform_indices = @transform_2, window_bounds = array<i64: 128, 512>}, {pipeline_mode = #tpu.pipeline_mode<synchronous>, transform_indices = @transform_3, window_bounds = array<i64: 1, 512>}, {transform_indices = @transform_4, window_bounds = array<i64: 32, 128>}]} {
    %c0_i32 = arith.constant 0 : i32
    %0 = arith.cmpi eq, %arg0, %c0_i32 : i32
    %1 = arith.extui %0 : i1 to i32
    %c0_i32_0 = arith.constant 0 : i32
    %2 = arith.cmpi ne, %1, %c0_i32_0 : i32
    scf.if %2 {
      %cst_68 = arith.constant 0.000000e+00 : f32
      %126 = vector.broadcast %cst_68 : f32 to vector<8x128xf32>
      %c0_69 = arith.constant 0 : index
      %c0_70 = arith.constant 0 : index
      %127 = vector.load %arg6[%c0_69, %c0_70] : memref<8x128xf32, #tpu.memory_space<vmem>>, vector<8x128xf32>
      tpu.vector_store %arg6[%c0_69, %c0_70], %126 {strides = array<i32>} : memref<8x128xf32, #tpu.memory_space<vmem>>, vector<8x128xf32>,
      %cst_71 = arith.constant 0.000000e+00 : f32
      %128 = vector.broadcast %cst_71 : f32 to vector<8x128xf32>
      %c0_72 = arith.constant 0 : index
      %c0_73 = arith.constant 0 : index
      %129 = vector.load %arg7[%c0_72, %c0_73] : memref<8x128xf32, #tpu.memory_space<vmem>>, vector<8x128xf32>
      tpu.vector_store %arg7[%c0_72, %c0_73], %128 {strides = array<i32>} : memref<8x128xf32, #tpu.memory_space<vmem>>, vector<8x128xf32>,
    } else {
    }
    %c0 = arith.constant 0 : index
    %c0_1 = arith.constant 0 : index
    %3 = vector.load %arg1[%c0, %c0_1] : memref<32x32xf32, #tpu.memory_space<vmem>>, vector<32x32xf32>
    %c0_2 = arith.constant 0 : index
    %c0_3 = arith.constant 0 : index
    %4 = vector.load %arg2[%c0_2, %c0_3] : memref<32x512xf32, #tpu.memory_space<vmem>>, vector<32x512xf32>
    %cst = arith.constant dense<0.000000e+00> : vector<32x512xf32>
    %5 = tpu.matmul %3, %4, %cst {dimension_numbers = #tpu.dot_dimension_numbers<[1], [0], [0], [1], [0, 0, 1, 1], [], []>} : vector<32x32xf32>, vector<32x512xf32>, vector<32x512xf32> -> vector<32x512xf32>
    %c0_4 = arith.constant 0 : index
    %c0_5 = arith.constant 0 : index
    %6 = vector.load %arg4[%c0_4, %c0_5] : memref<1x512xf32, #tpu.memory_space<vmem>>, vector<1x512xf32>
    %7 = vector.broadcast %6 : vector<1x512xf32> to vector<32x512xf32>
    %8 = arith.addf %5, %7 : vector<32x512xf32>
    %c0_6 = arith.constant 0 : index
    %c0_7 = arith.constant 0 : index
    %9 = vector.load %arg8[%c0_6, %c0_7] : memref<32x512xf32, #tpu.memory_space<vmem>>, vector<32x512xf32>
    tpu.vector_store %arg8[%c0_6, %c0_7], %8 {strides = array<i32>} : memref<32x512xf32, #tpu.memory_space<vmem>>, vector<32x512xf32>,
    %c0_i32_8 = arith.constant 0 : i32
    %c8_i32 = arith.constant 8 : i32
    %10 = arith.muli %c0_i32_8, %c8_i32 : i32
    %11 = tpu.assume_multiple %10, 8 : i32
    %12 = arith.index_cast %11 : i32 to index
    %c0_9 = arith.constant 0 : index
    %13 = vector.load %arg8[%12, %c0_9] : memref<32x512xf32, #tpu.memory_space<vmem>>, vector<8x512xf32>
    %c0_10 = arith.constant 0 : index
    %c0_11 = arith.constant 0 : index
    %14 = vector.load %arg6[%c0_10, %c0_11] : memref<8x128xf32, #tpu.memory_space<vmem>>, vector<8x128xf32>
    %c0_12 = arith.constant 0 : index
    %c0_13 = arith.constant 0 : index
    %15 = vector.load %arg3[%c0_12, %c0_13] : memref<128x512xf32, #tpu.memory_space<vmem>>, vector<128x512xf32>
    %cst_14 = arith.constant dense<0.000000e+00> : vector<8x512xf32>
    %16 = tpu.matmul %14, %15, %cst_14 {dimension_numbers = #tpu.dot_dimension_numbers<[1], [0], [0], [1], [0, 0, 1, 1], [], []>} : vector<8x128xf32>, vector<128x512xf32>, vector<8x512xf32> -> vector<8x512xf32>
    %17 = arith.addf %13, %16 : vector<8x512xf32>
    %18 = vector.extract_strided_slice %17 {offsets = [0, 0], sizes = [8, 384], strides = [1, 1]} : vector<8x512xf32> to vector<8x384xf32>
    %19 = arith.negf %18 : vector<8x384xf32>
    %20 = math.exp %19 : vector<8x384xf32>
    %cst_15 = arith.constant 1.000000e+00 : f32
    %21 = vector.broadcast %cst_15 : f32 to vector<8x384xf32>
    %22 = arith.addf %21, %20 : vector<8x384xf32>
    %23 = arith.divf %21, %22 : vector<8x384xf32>
    %24 = vector.extract_strided_slice %17 {offsets = [0, 384], sizes = [8, 128], strides = [1, 1]} : vector<8x512xf32> to vector<8x128xf32>
    %25 = math.tanh %24 : vector<8x128xf32>
    %26 = vector.extract_strided_slice %23 {offsets = [0, 0], sizes = [8, 128], strides = [1, 1]} : vector<8x384xf32> to vector<8x128xf32>
    %27 = vector.extract_strided_slice %23 {offsets = [0, 128], sizes = [8, 128], strides = [1, 1]} : vector<8x384xf32> to vector<8x128xf32>
    %28 = vector.extract_strided_slice %23 {offsets = [0, 256], sizes = [8, 128], strides = [1, 1]} : vector<8x384xf32> to vector<8x128xf32>
    %c0_16 = arith.constant 0 : index
    %c0_17 = arith.constant 0 : index
    %29 = vector.load %arg7[%c0_16, %c0_17] : memref<8x128xf32, #tpu.memory_space<vmem>>, vector<8x128xf32>
    %30 = arith.mulf %27, %29 : vector<8x128xf32>
    %31 = arith.mulf %26, %25 : vector<8x128xf32>
    %32 = arith.addf %30, %31 : vector<8x128xf32>
    %33 = math.tanh %32 : vector<8x128xf32>
    %34 = arith.mulf %28, %33 : vector<8x128xf32>
    %c0_18 = arith.constant 0 : index
    %c0_19 = arith.constant 0 : index
    %35 = vector.load %arg7[%c0_18, %c0_19] : memref<8x128xf32, #tpu.memory_space<vmem>>, vector<8x128xf32>
    tpu.vector_store %arg7[%c0_18, %c0_19], %32 {strides = array<i32>} : memref<8x128xf32, #tpu.memory_space<vmem>>, vector<8x128xf32>,
    %c0_20 = arith.constant 0 : index
    %c0_21 = arith.constant 0 : index
    %36 = vector.load %arg6[%c0_20, %c0_21] : memref<8x128xf32, #tpu.memory_space<vmem>>, vector<8x128xf32>
    tpu.vector_store %arg6[%c0_20, %c0_21], %34 {strides = array<i32>} : memref<8x128xf32, #tpu.memory_space<vmem>>, vector<8x128xf32>,
    %37 = arith.index_cast %11 : i32 to index
    %c0_22 = arith.constant 0 : index
    %38 = vector.load %arg5[%37, %c0_22] : memref<32x128xf32, #tpu.memory_space<vmem>>, vector<8x128xf32>
    tpu.vector_store %arg5[%37, %c0_22], %34 {strides = array<i32>} : memref<32x128xf32, #tpu.memory_space<vmem>>, vector<8x128xf32>,
    %c1_i32 = arith.constant 1 : i32
    %c8_i32_23 = arith.constant 8 : i32
    %39 = arith.muli %c1_i32, %c8_i32_23 : i32
    %40 = tpu.assume_multiple %39, 8 : i32
    %41 = arith.index_cast %40 : i32 to index
    %c0_24 = arith.constant 0 : index
    %42 = vector.load %arg8[%41, %c0_24] : memref<32x512xf32, #tpu.memory_space<vmem>>, vector<8x512xf32>
    %c0_25 = arith.constant 0 : index
    %c0_26 = arith.constant 0 : index
    %43 = vector.load %arg6[%c0_25, %c0_26] : memref<8x128xf32, #tpu.memory_space<vmem>>, vector<8x128xf32>
    %c0_27 = arith.constant 0 : index
    %c0_28 = arith.constant 0 : index
    %44 = vector.load %arg3[%c0_27, %c0_28] : memref<128x512xf32, #tpu.memory_space<vmem>>, vector<128x512xf32>
    %cst_29 = arith.constant dense<0.000000e+00> : vector<8x512xf32>
    %45 = tpu.matmul %43, %44, %cst_29 {dimension_numbers = #tpu.dot_dimension_numbers<[1], [0], [0], [1], [0, 0, 1, 1], [], []>} : vector<8x128xf32>, vector<128x512xf32>, vector<8x512xf32> -> vector<8x512xf32>
    %46 = arith.addf %42, %45 : vector<8x512xf32>
    %47 = vector.extract_strided_slice %46 {offsets = [0, 0], sizes = [8, 384], strides = [1, 1]} : vector<8x512xf32> to vector<8x384xf32>
    %48 = arith.negf %47 : vector<8x384xf32>
    %49 = math.exp %48 : vector<8x384xf32>
    %cst_30 = arith.constant 1.000000e+00 : f32
    %50 = vector.broadcast %cst_30 : f32 to vector<8x384xf32>
    %51 = arith.addf %50, %49 : vector<8x384xf32>
    %52 = arith.divf %50, %51 : vector<8x384xf32>
    %53 = vector.extract_strided_slice %46 {offsets = [0, 384], sizes = [8, 128], strides = [1, 1]} : vector<8x512xf32> to vector<8x128xf32>
    %54 = math.tanh %53 : vector<8x128xf32>
    %55 = vector.extract_strided_slice %52 {offsets = [0, 0], sizes = [8, 128], strides = [1, 1]} : vector<8x384xf32> to vector<8x128xf32>
    %56 = vector.extract_strided_slice %52 {offsets = [0, 128], sizes = [8, 128], strides = [1, 1]} : vector<8x384xf32> to vector<8x128xf32>
    %57 = vector.extract_strided_slice %52 {offsets = [0, 256], sizes = [8, 128], strides = [1, 1]} : vector<8x384xf32> to vector<8x128xf32>
    %c0_31 = arith.constant 0 : index
    %c0_32 = arith.constant 0 : index
    %58 = vector.load %arg7[%c0_31, %c0_32] : memref<8x128xf32, #tpu.memory_space<vmem>>, vector<8x128xf32>
    %59 = arith.mulf %56, %58 : vector<8x128xf32>
    %60 = arith.mulf %55, %54 : vector<8x128xf32>
    %61 = arith.addf %59, %60 : vector<8x128xf32>
    %62 = math.tanh %61 : vector<8x128xf32>
    %63 = arith.mulf %57, %62 : vector<8x128xf32>
    %c0_33 = arith.constant 0 : index
    %c0_34 = arith.constant 0 : index
    %64 = vector.load %arg7[%c0_33, %c0_34] : memref<8x128xf32, #tpu.memory_space<vmem>>, vector<8x128xf32>
    tpu.vector_store %arg7[%c0_33, %c0_34], %61 {strides = array<i32>} : memref<8x128xf32, #tpu.memory_space<vmem>>, vector<8x128xf32>,
    %c0_35 = arith.constant 0 : index
    %c0_36 = arith.constant 0 : index
    %65 = vector.load %arg6[%c0_35, %c0_36] : memref<8x128xf32, #tpu.memory_space<vmem>>, vector<8x128xf32>
    tpu.vector_store %arg6[%c0_35, %c0_36], %63 {strides = array<i32>} : memref<8x128xf32, #tpu.memory_space<vmem>>, vector<8x128xf32>,
    %66 = arith.index_cast %40 : i32 to index
    %c0_37 = arith.constant 0 : index
    %67 = vector.load %arg5[%66, %c0_37] : memref<32x128xf32, #tpu.memory_space<vmem>>, vector<8x128xf32>
    tpu.vector_store %arg5[%66, %c0_37], %63 {strides = array<i32>} : memref<32x128xf32, #tpu.memory_space<vmem>>, vector<8x128xf32>,
    %c2_i32 = arith.constant 2 : i32
    %c8_i32_38 = arith.constant 8 : i32
    %68 = arith.muli %c2_i32, %c8_i32_38 : i32
    %69 = tpu.assume_multiple %68, 8 : i32
    %70 = arith.index_cast %69 : i32 to index
    %c0_39 = arith.constant 0 : index
    %71 = vector.load %arg8[%70, %c0_39] : memref<32x512xf32, #tpu.memory_space<vmem>>, vector<8x512xf32>
    %c0_40 = arith.constant 0 : index
    %c0_41 = arith.constant 0 : index
    %72 = vector.load %arg6[%c0_40, %c0_41] : memref<8x128xf32, #tpu.memory_space<vmem>>, vector<8x128xf32>
    %c0_42 = arith.constant 0 : index
    %c0_43 = arith.constant 0 : index
    %73 = vector.load %arg3[%c0_42, %c0_43] : memref<128x512xf32, #tpu.memory_space<vmem>>, vector<128x512xf32>
    %cst_44 = arith.constant dense<0.000000e+00> : vector<8x512xf32>
    %74 = tpu.matmul %72, %73, %cst_44 {dimension_numbers = #tpu.dot_dimension_numbers<[1], [0], [0], [1], [0, 0, 1, 1], [], []>} : vector<8x128xf32>, vector<128x512xf32>, vector<8x512xf32> -> vector<8x512xf32>
    %75 = arith.addf %71, %74 : vector<8x512xf32>
    %76 = vector.extract_strided_slice %75 {offsets = [0, 0], sizes = [8, 384], strides = [1, 1]} : vector<8x512xf32> to vector<8x384xf32>
    %77 = arith.negf %76 : vector<8x384xf32>
    %78 = math.exp %77 : vector<8x384xf32>
    %cst_45 = arith.constant 1.000000e+00 : f32
    %79 = vector.broadcast %cst_45 : f32 to vector<8x384xf32>
    %80 = arith.addf %79, %78 : vector<8x384xf32>
    %81 = arith.divf %79, %80 : vector<8x384xf32>
    %82 = vector.extract_strided_slice %75 {offsets = [0, 384], sizes = [8, 128], strides = [1, 1]} : vector<8x512xf32> to vector<8x128xf32>
    %83 = math.tanh %82 : vector<8x128xf32>
    %84 = vector.extract_strided_slice %81 {offsets = [0, 0], sizes = [8, 128], strides = [1, 1]} : vector<8x384xf32> to vector<8x128xf32>
    %85 = vector.extract_strided_slice %81 {offsets = [0, 128], sizes = [8, 128], strides = [1, 1]} : vector<8x384xf32> to vector<8x128xf32>
    %86 = vector.extract_strided_slice %81 {offsets = [0, 256], sizes = [8, 128], strides = [1, 1]} : vector<8x384xf32> to vector<8x128xf32>
    %c0_46 = arith.constant 0 : index
    %c0_47 = arith.constant 0 : index
    %87 = vector.load %arg7[%c0_46, %c0_47] : memref<8x128xf32, #tpu.memory_space<vmem>>, vector<8x128xf32>
    %88 = arith.mulf %85, %87 : vector<8x128xf32>
    %89 = arith.mulf %84, %83 : vector<8x128xf32>
    %90 = arith.addf %88, %89 : vector<8x128xf32>
    %91 = math.tanh %90 : vector<8x128xf32>
    %92 = arith.mulf %86, %91 : vector<8x128xf32>
    %c0_48 = arith.constant 0 : index
    %c0_49 = arith.constant 0 : index
    %93 = vector.load %arg7[%c0_48, %c0_49] : memref<8x128xf32, #tpu.memory_space<vmem>>, vector<8x128xf32>
    tpu.vector_store %arg7[%c0_48, %c0_49], %90 {strides = array<i32>} : memref<8x128xf32, #tpu.memory_space<vmem>>, vector<8x128xf32>,
    %c0_50 = arith.constant 0 : index
    %c0_51 = arith.constant 0 : index
    %94 = vector.load %arg6[%c0_50, %c0_51] : memref<8x128xf32, #tpu.memory_space<vmem>>, vector<8x128xf32>
    tpu.vector_store %arg6[%c0_50, %c0_51], %92 {strides = array<i32>} : memref<8x128xf32, #tpu.memory_space<vmem>>, vector<8x128xf32>,
    %95 = arith.index_cast %69 : i32 to index
    %c0_52 = arith.constant 0 : index
    %96 = vector.load %arg5[%95, %c0_52] : memref<32x128xf32, #tpu.memory_space<vmem>>, vector<8x128xf32>
    tpu.vector_store %arg5[%95, %c0_52], %92 {strides = array<i32>} : memref<32x128xf32, #tpu.memory_space<vmem>>, vector<8x128xf32>,
    %c3_i32 = arith.constant 3 : i32
    %c8_i32_53 = arith.constant 8 : i32
    %97 = arith.muli %c3_i32, %c8_i32_53 : i32
    %98 = tpu.assume_multiple %97, 8 : i32
    %99 = arith.index_cast %98 : i32 to index
    %c0_54 = arith.constant 0 : index
    %100 = vector.load %arg8[%99, %c0_54] : memref<32x512xf32, #tpu.memory_space<vmem>>, vector<8x512xf32>
    %c0_55 = arith.constant 0 : index
    %c0_56 = arith.constant 0 : index
    %101 = vector.load %arg6[%c0_55, %c0_56] : memref<8x128xf32, #tpu.memory_space<vmem>>, vector<8x128xf32>
    %c0_57 = arith.constant 0 : index
    %c0_58 = arith.constant 0 : index
    %102 = vector.load %arg3[%c0_57, %c0_58] : memref<128x512xf32, #tpu.memory_space<vmem>>, vector<128x512xf32>
    %cst_59 = arith.constant dense<0.000000e+00> : vector<8x512xf32>
    %103 = tpu.matmul %101, %102, %cst_59 {dimension_numbers = #tpu.dot_dimension_numbers<[1], [0], [0], [1], [0, 0, 1, 1], [], []>} : vector<8x128xf32>, vector<128x512xf32>, vector<8x512xf32> -> vector<8x512xf32>
    %104 = arith.addf %100, %103 : vector<8x512xf32>
    %105 = vector.extract_strided_slice %104 {offsets = [0, 0], sizes = [8, 384], strides = [1, 1]} : vector<8x512xf32> to vector<8x384xf32>
    %106 = arith.negf %105 : vector<8x384xf32>
    %107 = math.exp %106 : vector<8x384xf32>
    %cst_60 = arith.constant 1.000000e+00 : f32
    %108 = vector.broadcast %cst_60 : f32 to vector<8x384xf32>
    %109 = arith.addf %108, %107 : vector<8x384xf32>
    %110 = arith.divf %108, %109 : vector<8x384xf32>
    %111 = vector.extract_strided_slice %104 {offsets = [0, 384], sizes = [8, 128], strides = [1, 1]} : vector<8x512xf32> to vector<8x128xf32>
    %112 = math.tanh %111 : vector<8x128xf32>
    %113 = vector.extract_strided_slice %110 {offsets = [0, 0], sizes = [8, 128], strides = [1, 1]} : vector<8x384xf32> to vector<8x128xf32>
    %114 = vector.extract_strided_slice %110 {offsets = [0, 128], sizes = [8, 128], strides = [1, 1]} : vector<8x384xf32> to vector<8x128xf32>
    %115 = vector.extract_strided_slice %110 {offsets = [0, 256], sizes = [8, 128], strides = [1, 1]} : vector<8x384xf32> to vector<8x128xf32>
    %c0_61 = arith.constant 0 : index
    %c0_62 = arith.constant 0 : index
    %116 = vector.load %arg7[%c0_61, %c0_62] : memref<8x128xf32, #tpu.memory_space<vmem>>, vector<8x128xf32>
    %117 = arith.mulf %114, %116 : vector<8x128xf32>
    %118 = arith.mulf %113, %112 : vector<8x128xf32>
    %119 = arith.addf %117, %118 : vector<8x128xf32>
    %120 = math.tanh %119 : vector<8x128xf32>
    %121 = arith.mulf %115, %120 : vector<8x128xf32>
    %c0_63 = arith.constant 0 : index
    %c0_64 = arith.constant 0 : index
    %122 = vector.load %arg7[%c0_63, %c0_64] : memref<8x128xf32, #tpu.memory_space<vmem>>, vector<8x128xf32>
    tpu.vector_store %arg7[%c0_63, %c0_64], %119 {strides = array<i32>} : memref<8x128xf32, #tpu.memory_space<vmem>>, vector<8x128xf32>,
    %c0_65 = arith.constant 0 : index
    %c0_66 = arith.constant 0 : index
    %123 = vector.load %arg6[%c0_65, %c0_66] : memref<8x128xf32, #tpu.memory_space<vmem>>, vector<8x128xf32>
    tpu.vector_store %arg6[%c0_65, %c0_66], %121 {strides = array<i32>} : memref<8x128xf32, #tpu.memory_space<vmem>>, vector<8x128xf32>,
    %124 = arith.index_cast %98 : i32 to index
    %c0_67 = arith.constant 0 : index
    %125 = vector.load %arg5[%124, %c0_67] : memref<32x128xf32, #tpu.memory_space<vmem>>, vector<8x128xf32>
    tpu.vector_store %arg5[%124, %c0_67], %121 {strides = array<i32>} : memref<32x128xf32, #tpu.memory_space<vmem>>, vector<8x128xf32>,
    %c4_i32 = arith.constant 4 : i32
    return
  }
  func.func @transform_0(%arg0: i32) -> (i32, i32) {
    %c0_i32 = arith.constant 0 : i32
    %c0_i32_0 = arith.constant 0 : i32
    return %arg0, %c0_i32 : i32, i32
  }
  func.func @transform_1(%arg0: i32) -> (i32, i32) {
    %c0_i32 = arith.constant 0 : i32
    %c0_i32_0 = arith.constant 0 : i32
    %c0_i32_1 = arith.constant 0 : i32
    return %c0_i32, %c0_i32_0 : i32, i32
  }
  func.func @transform_2(%arg0: i32) -> (i32, i32) {
    %c0_i32 = arith.constant 0 : i32
    %c0_i32_0 = arith.constant 0 : i32
    %c0_i32_1 = arith.constant 0 : i32
    return %c0_i32, %c0_i32_0 : i32, i32
  }
  func.func @transform_3(%arg0: i32) -> (i32, i32) {
    %c0_i32 = arith.constant 0 : i32
    %c0_i32_0 = arith.constant 0 : i32
    %c0_i32_1 = arith.constant 0 : i32
    return %c0_i32, %c0_i32_0 : i32, i32
  }
  func.func @transform_4(%arg0: i32) -> (i32, i32) {
    %c0_i32 = arith.constant 0 : i32
    %c0_i32_0 = arith.constant 0 : i32
    return %arg0, %c0_i32 : i32, i32
  }
}

</mosaic_0001>

<llo_original>
// kernel: tpu_custom_call.1
$region0: #{tpu_custom_call.1}
  #allocation0 [shape = 'u32[]', space=smem, size = 0x4, offset = 0x4, fixed_abs, tag = 'smem constant byte address 0x4 - core index']
  #allocation1 [shape = 'u32[72,128]{1,0:T(1,128)}', space=vmem, size = 0x9000, scoped, tag = 'internal scratch']
  #allocation2 [shape = 'f32[8,128]{1,0:T(8,128)}', space=vmem, size = 0x1000, scoped, tag = 'scratch operand']
  #allocation3 [shape = 'f32[8,128]{1,0:T(8,128)}', space=vmem, size = 0x1000, scoped, tag = 'scratch operand']
  #allocation4 [shape = 'f32[32,512]{1,0:T(8,128)}', space=vmem, size = 0x10000, scoped, tag = 'scratch operand']
  %s0 = inlined_call_operand.vmem [shape: f32[128,32], index: 0, kind: input, shape index: {}]
  %s1 = inlined_call_operand.vmem [shape: f32[32,512], index: 1, kind: input, shape index: {}]
  %s2 = inlined_call_operand.hbm [shape: f32[128,512], index: 2, kind: input, shape index: {}]
  %s3 = inlined_call_operand.vmem [shape: f32[1,512], index: 3, kind: input, shape index: {}]
  %s4 = inlined_call_operand.hbm [shape: f32[128,128], index: 4, kind: output, shape index: {}]
  %s5 = sld [smem:[#allocation0]]
  $region57: #{tpu_custom_call.1} parent=0
    _
  %s7 = ssub.s32 1, %s5
  %s8 = scalar_select 0, %s7, %s5
  $region1: #{tpu_custom_call.1} parent=0
    #allocation5 [shape = 'u8[262144]{0}', space=vmem, size = 0x40000, scoped, tag = 'input window, operand 2, single buffered']
    #allocation6 [shape = 's32[2]{0}', space=sflag, size = 0x8, scoped, tag = 'scoped memory for tpu_custom_call.1']
    #allocation7 [shape = 's32[2]{0}', space=sflag, size = 0x8, scoped, tag = 'scoped memory for tpu_custom_call.1']
    #allocation8 [shape = 'u8[32768]{0}', space=vmem, size = 0x8000, scoped, tag = 'output window, operand 0']
    %9 = vsyncpa [#allocation6], 0
    %10 = vsyncpa [#allocation7], 0
    %s11 = scalar_lea.sflag [#allocation7], 1
    %12 = vsyncpa %s11, 0
    loop: start=0, step=1, limit=6
    $region2: #{tpu_custom_call.1} parent=1 // loop_pre_header
      _
    $region3: #{tpu_custom_call.1} parent=1 // loop_header
      %s14 = sphi 0, %s18
      %p15 = scmp.ge.s32.totalorder %s14, 6
      %s24 = sphi 0, %s26
      %s27 = sphi 0, %s24
      %s28 = sphi 0, %s27
      %s44 = sphi 0, %s28
      %s48 = sphi 0, %s48
      %s50 = sphi 0, %s48
      %s51 = sphi 0, %s50
      %s65 = sphi 0, %s51
      %s69 = sphi 0, %s69
      %s71 = sphi 0, %s69
      %s72 = sphi 0, %s71
      %s86 = sphi 0, %s72
      %s90 = sphi 0, %s90
      %s92 = sphi 0, %s90
      %s93 = sphi 0, %s92
      %s107 = sphi 0, %s93
      %s113 = sphi 0, %s115
      %s116 = sphi 0, %s113
      %s117 = sphi 0, %s116
      %s133 = sphi 0, %s117
    $region4: #{tpu_custom_call.1} parent=1 // loop_header_branch
      %17 = sbr.rel (%p15) target = $region8
    $region5: #{tpu_custom_call.1} parent=1 // loop_body
      %s19 = ssub.s32 %s14, 1
      %s20 = ssub.s32 %s14, 2
      %s21 = sadd.s32 %s14, 1
      %s22 = ssub.s32 %s14, %s21
      %p23 = scmp.eq.s32.totalorder %s22, 0
      %s25 = sadd.s32 %s24, 1
      %s26 = scalar_select %p23, %s24, %s25
      %p29 = pneg %p23
      %p30 = scmp.eq.s32.totalorder %s14, 3
      %p31 = por %p29, %p30
      %p32 = scmp.ne.s32.totalorder %s24, %s27
      %p33 = scmp.eq.s32.totalorder %s14, 0
      %p34 = por %p32, %p33
      %p35 = scmp.ne.s32.totalorder %s24, %s27
      %p36 = scmp.eq.s32.totalorder %s19, 3
      %p37 = por %p35, %p36
      %p38 = scmp.ne.s32.totalorder %s27, %s28
      %p39 = scmp.eq.s32.totalorder %s19, 0
      %p40 = por %p38, %p39
      %p41 = scmp.ne.s32.totalorder %s27, %s28
      %p42 = scmp.eq.s32.totalorder %s20, 3
      %p43 = por %p41, %p42
      %p45 = scmp.ne.s32.totalorder %s28, %s44
      %p46 = scmp.eq.s32.totalorder %s20, 0
      %p47 = por %p45, %p46
      %s49 = sadd.s32 %s48, 1
      %p52 = scmp.eq.s32.totalorder %s14, 3
      %p53 = scmp.ne.s32.totalorder %s48, %s50
      %p54 = scmp.eq.s32.totalorder %s14, 0
      %p55 = por %p53, %p54
      %p56 = scmp.ne.s32.totalorder %s48, %s50
      %p57 = scmp.eq.s32.totalorder %s19, 3
      %p58 = por %p56, %p57
      %p59 = scmp.ne.s32.totalorder %s50, %s51
      %p60 = scmp.eq.s32.totalorder %s19, 0
      %p61 = por %p59, %p60
      %p62 = scmp.ne.s32.totalorder %s50, %s51
      %p63 = scmp.eq.s32.totalorder %s20, 3
      %p64 = por %p62, %p63
      %p66 = scmp.ne.s32.totalorder %s51, %s65
      %p67 = scmp.eq.s32.totalorder %s20, 0
      %p68 = por %p66, %p67
      %s70 = sadd.s32 %s69, 1
      %p73 = scmp.eq.s32.totalorder %s14, 3
      %p74 = scmp.ne.s32.totalorder %s69, %s71
      %p75 = scmp.eq.s32.totalorder %s14, 0
      %p76 = por %p74, %p75
      %p77 = scmp.ne.s32.totalorder %s69, %s71
      %p78 = scmp.eq.s32.totalorder %s19, 3
      %p79 = por %p77, %p78
      %p80 = scmp.ne.s32.totalorder %s71, %s72
      %p81 = scmp.eq.s32.totalorder %s19, 0
      %p82 = por %p80, %p81
      %p83 = scmp.ne.s32.totalorder %s71, %s72
      %p84 = scmp.eq.s32.totalorder %s20, 3
      %p85 = por %p83, %p84
      %p87 = scmp.ne.s32.totalorder %s72, %s86
      %p88 = scmp.eq.s32.totalorder %s20, 0
      %p89 = por %p87, %p88
      %s91 = sadd.s32 %s90, 1
      %p94 = scmp.eq.s32.totalorder %s14, 3
      %p95 = scmp.ne.s32.totalorder %s90, %s92
      %p96 = scmp.eq.s32.totalorder %s14, 0
      %p97 = por %p95, %p96
      %p98 = scmp.ne.s32.totalorder %s90, %s92
      %p99 = scmp.eq.s32.totalorder %s19, 3
      %p100 = por %p98, %p99
      %p101 = scmp.ne.s32.totalorder %s92, %s93
      %p102 = scmp.eq.s32.totalorder %s19, 0
      %p103 = por %p101, %p102
      %p104 = scmp.ne.s32.totalorder %s92, %s93
      %p105 = scmp.eq.s32.totalorder %s20, 3
      %p106 = por %p104, %p105
      %p108 = scmp.ne.s32.totalorder %s93, %s107
      %p109 = scmp.eq.s32.totalorder %s20, 0
      %p110 = por %p108, %p109
      %s111 = ssub.s32 %s14, %s21
      %p112 = scmp.eq.s32.totalorder %s111, 0
      %s114 = sadd.s32 %s113, 1
      %s115 = scalar_select %p112, %s113, %s114
      %p118 = pneg %p112
      %p119 = scmp.eq.s32.totalorder %s14, 3
      %p120 = por %p118, %p119
      %p121 = scmp.ne.s32.totalorder %s113, %s116
      %p122 = scmp.eq.s32.totalorder %s14, 0
      %p123 = por %p121, %p122
      %p124 = scmp.ne.s32.totalorder %s113, %s116
      %p125 = scmp.eq.s32.totalorder %s19, 3
      %p126 = por %p124, %p125
      %p127 = scmp.ne.s32.totalorder %s116, %s117
      %p128 = scmp.eq.s32.totalorder %s19, 0
      %p129 = por %p127, %p128
      %p130 = scmp.ne.s32.totalorder %s116, %s117
      %p131 = scmp.eq.s32.totalorder %s20, 3
      %p132 = por %p130, %p131
      %p134 = scmp.ne.s32.totalorder %s117, %s133
      %p135 = scmp.eq.s32.totalorder %s20, 0
      %p136 = por %p134, %p135
      %p137 = scmp.le.s32.totalorder 1, %s14
      %p138 = scmp.lt.s32.totalorder %s14, 5
      %p139 = pnand %p137, %p138
      %p140 = pneg %p139
      // Predicated region
      $region9: #{tpu_custom_call.1} parent=5 // pred_check
        _
      $region10: #{tpu_custom_call.1} parent=5 // pred_check_branch
        %142 = sbr.rel (%p139) target = $region12
      $region11: #{tpu_custom_call.1} parent=5 // pred_region
        %s143 = ssub.s32 %s14, 1
        // Predicated region
        $region13: #{tpu_custom_call.1} parent=11 // pred_check
          %p144 = pneg %p61
        $region14: #{tpu_custom_call.1} parent=11 // pred_check_branch
          %146 = sbr.rel (%p144) target = $region16
        $region15: #{tpu_custom_call.1} parent=11 // pred_region
          _
        $region16: #{tpu_custom_call.1} parent=11 // pred_fallthru
          _
        // Predicated region
        $region17: #{tpu_custom_call.1} parent=11 // pred_check
          %p147 = pneg %p82
        $region18: #{tpu_custom_call.1} parent=11 // pred_check_branch
          %149 = sbr.rel (%p147) target = $region20
        $region19: #{tpu_custom_call.1} parent=11 // pred_region
          %151 = vsyncadd [#allocation6], 0
          %s152 = sshll.u32 %s2, 4
          %s153 = int_to_ptr.hbm [resolvable:$true] %s152
          %s154 = sshll.u32 [#allocation5], 4
          %s155 = int_to_ptr.vmem [resolvable:$true] %s154
          %160 = dma.hbm_to_vmem [thread:$0]  %s153, 8192, %s155, [#allocation6], 512, 512, 32
        $region20: #{tpu_custom_call.1} parent=11 // pred_fallthru
          _
        // Predicated region
        $region21: #{tpu_custom_call.1} parent=11 // pred_check
          %p161 = pneg %p103
        $region22: #{tpu_custom_call.1} parent=11 // pred_check_branch
          %163 = sbr.rel (%p161) target = $region24
        $region23: #{tpu_custom_call.1} parent=11 // pred_region
          _
        $region24: #{tpu_custom_call.1} parent=11 // pred_fallthru
          _
      $region12: #{tpu_custom_call.1} parent=5 // pred_fallthru
        _
      %p164 = scmp.lt.s32.totalorder %s14, 4
      // Predicated region
      $region25: #{tpu_custom_call.1} parent=5 // pred_check
        %p165 = pneg %p164
      $region26: #{tpu_custom_call.1} parent=5 // pred_check_branch
        %167 = sbr.rel (%p165) target = $region28
      $region27: #{tpu_custom_call.1} parent=5 // pred_region
        // Predicated region
        $region29: #{tpu_custom_call.1} parent=27 // pred_check
          %p168 = pneg %p34
        $region30: #{tpu_custom_call.1} parent=27 // pred_check_branch
          %170 = sbr.rel (%p168) target = $region32
        $region31: #{tpu_custom_call.1} parent=27 // pred_region
          %s171 = smul.u32 4, %s14
          %p172 = scmp.lt.s32.totalorder %s171, 15
          %s173 = scalar_select %p172, %s171, 15
          %s174 = smul.addr %s173, 8
          %s175 = scalar_lea.vmem %s0, %s174
          %s176 = smul.u32 4, %s14
        $region32: #{tpu_custom_call.1} parent=27 // pred_fallthru
          _
      $region28: #{tpu_custom_call.1} parent=5 // pred_fallthru
        _
      %p177 = scmp.le.s32.totalorder 1, %s14
      %p178 = scmp.lt.s32.totalorder %s14, 5
      %p179 = pnand %p177, %p178
      %p180 = pneg %p179
      // Predicated region
      $region33: #{tpu_custom_call.1} parent=5 // pred_check
        _
      $region34: #{tpu_custom_call.1} parent=5 // pred_check_branch
        %182 = sbr.rel (%p179) target = $region36
      $region35: #{tpu_custom_call.1} parent=5 // pred_region
        %s183 = ssub.s32 %s14, 1
        // Predicated region
        $region37: #{tpu_custom_call.1} parent=35 // pred_check
          %p184 = pneg %p82
        $region38: #{tpu_custom_call.1} parent=35 // pred_check_branch
          %186 = sbr.rel (%p184) target = $region40
        $region39: #{tpu_custom_call.1} parent=35 // pred_region
          %188 = dma.done [#allocation6], 8192
        $region40: #{tpu_custom_call.1} parent=35 // pred_fallthru
          _
        %s189 = smul.u32 4, %s19
        %p190 = scmp.lt.s32.totalorder %s189, 15
        %s191 = scalar_select %p190, %s189, 15
        %s192 = smul.addr %s191, 8
        %s193 = scalar_lea.vmem %s0, %s192
        %p194 = pneg %p40
        %p195 = pneg %p37
        %p196 = pneg %p61
        %p197 = pneg %p58
        %p198 = pneg %p82
        %p199 = pneg %p79
        %p200 = pneg %p103
        %p201 = pneg %p100
        %p202 = pneg %p129
        %p203 = pneg %p126
        %s204 = sand.u32 %s116, 1
        %s205 = scalar_lea.sflag [#allocation7], %s204
        %s206 = sand.u32 %s116, 1
        %s207 = smul.addr %s206, 32
        %s208 = scalar_lea.vmem [#allocation8], %s207
        %s209 = smul.u32 4, %s19
        %p210 = scmp.lt.s32.totalorder %s209, 15
        %s211 = scalar_select %p210, %s209, 15
        %s212 = smul.addr %s211, 8
        %s213 = scalar_lea.vmem %s0, %s212
        %s214 = smul.u32 4, %s19
        %s215 = smul.u32 4, %s19
        %p216 = scmp.eq.s32.totalorder %s19, 0
        // Predicated region
        $region41: #{tpu_custom_call.1} parent=35 // pred_check
          %p217 = pneg %p216
        $region42: #{tpu_custom_call.1} parent=35 // pred_check_branch
          %219 = sbr.rel (%p217) target = $region44
        $region43: #{tpu_custom_call.1} parent=35 // pred_region
          %220 = vst [vmem:[#allocation2] sm:$0xff] 0.0
          %221 = vst [vmem:[#allocation3] sm:$0xff] 0.0
        $region44: #{tpu_custom_call.1} parent=35 // pred_fallthru
          _
        %v222 = vld [vmem:[%s213] sm:$0xff]
        %v223 = vld [vmem:[%s213 + $0x8] sm:$0xff]
        %v224 = vld [vmem:[%s213 + $0x10] sm:$0xff]
        %v225 = vld [vmem:[%s213 + $0x18] sm:$0xff]
        %v226 = vld [vmem:[%s1] sm:$0xff]
        %v227 = vld [vmem:[%s1 + $0x8] sm:$0xff]
        %v228 = vld [vmem:[%s1 + $0x10] sm:$0xff]
        %v229 = vld [vmem:[%s1 + $0x18] sm:$0xff]
        %v230 = vld [vmem:[%s1 + $0x20] sm:$0xff]
        %v231 = vld [vmem:[%s1 + $0x28] sm:$0xff]
        %v232 = vld [vmem:[%s1 + $0x30] sm:$0xff]
        %v233 = vld [vmem:[%s1 + $0x38] sm:$0xff]
        %v234 = vld [vmem:[%s1 + $0x40] sm:$0xff]
        %v235 = vld [vmem:[%s1 + $0x48] sm:$0xff]
        %v236 = vld [vmem:[%s1 + $0x50] sm:$0xff]
        %v237 = vld [vmem:[%s1 + $0x58] sm:$0xff]
        %v238 = vld [vmem:[%s1 + $0x60] sm:$0xff]
        %v239 = vld [vmem:[%s1 + $0x68] sm:$0xff]
        %v240 = vld [vmem:[%s1 + $0x70] sm:$0xff]
        %v241 = vld [vmem:[%s1 + $0x78] sm:$0xff]
        %v242 = vld [vmem:[%s3] sm:$0xf]
        %v244 = vperm.slane %v242, 0
        %v245 = vperm.slane %v242, 1
        %v246 = vperm.slane %v242, 2
        %v247 = vperm.slane %v242, 3
        %vm252 = vcmask 261120
        %v254 = vsel %vm252, %v222, 0
        %v257 = vsel %vm252, %v223, 0
        %v260 = vsel %vm252, %v224, 0
        %v263 = vsel %vm252, %v225, 0
        %265 = vmatpush.msra.mxu0 0.0
        %266 = vmatpush.msra.mxu0 0.0
        %267 = vmatpush.msra.mxu0 0.0
        %268 = vmatpush.msra.mxu0 0.0
        %269 = vmatpush.msra.mxu0 0.0
        %270 = vmatpush.msra.mxu0 0.0
        %271 = vmatpush.msra.mxu0 0.0
        %272 = vmatpush.msra.mxu0 0.0
        %273 = vmatpush.msra.mxu0 0.0
        %274 = vmatpush.msra.mxu0 0.0
        %275 = vmatpush.msra.mxu0 0.0
        %276 = vmatpush.msra.mxu0 0.0
        %277 = vmatpush.msra.mxu0 %v238
        %278 = vmatpush.msra.mxu0 %v234
        %279 = vmatpush.msra.mxu0 %v230
        %280 = vmatpush.msra.mxu0 %v226
        %281 = vmatmul.f32.gmra.mxu0 %v254
        %v282 = vpop.f32.mrf.mxu0
        %v283 = vadd.f32 %v244, %v282
        %284 = vmatmul.f32.gmra.mxu0 %v257
        %v285 = vpop.f32.mrf.mxu0
        %v286 = vadd.f32 %v244, %v285
        %287 = vmatmul.f32.gmra.mxu0 %v260
        %v288 = vpop.f32.mrf.mxu0
        %v289 = vadd.f32 %v244, %v288
        %290 = vmatmul.f32.gmra.mxu0 %v263
        %v291 = vpop.f32.mrf.mxu0
        %v292 = vadd.f32 %v244, %v291
        %293 = vdwg.mxu0
        %294 = vmatpush.msra.mxu0 0.0
        %295 = vmatpush.msra.mxu0 0.0
        %296 = vmatpush.msra.mxu0 0.0
        %297 = vmatpush.msra.mxu0 0.0
        %298 = vmatpush.msra.mxu0 0.0
        %299 = vmatpush.msra.mxu0 0.0
        %300 = vmatpush.msra.mxu0 0.0
        %301 = vmatpush.msra.mxu0 0.0
        %302 = vmatpush.msra.mxu0 0.0
        %303 = vmatpush.msra.mxu0 0.0
        %304 = vmatpush.msra.mxu0 0.0
        %305 = vmatpush.msra.mxu0 0.0
        %306 = vmatpush.msra.mxu0 %v239
        %307 = vmatpush.msra.mxu0 %v235
        %308 = vmatpush.msra.mxu0 %v231
        %309 = vmatpush.msra.mxu0 %v227
        %310 = vmatmul.f32.gmra.mxu0 %v254
        %v311 = vpop.f32.mrf.mxu0
        %v312 = vadd.f32 %v245, %v311
        %313 = vmatmul.f32.gmra.mxu0 %v257
        %v314 = vpop.f32.mrf.mxu0
        %v315 = vadd.f32 %v245, %v314
        %316 = vmatmul.f32.gmra.mxu0 %v260
        %v317 = vpop.f32.mrf.mxu0
        %v318 = vadd.f32 %v245, %v317
        %319 = vmatmul.f32.gmra.mxu0 %v263
        %v320 = vpop.f32.mrf.mxu0
        %v321 = vadd.f32 %v245, %v320
        %322 = vdwg.mxu0
        %323 = vmatpush.msra.mxu0 0.0
        %324 = vmatpush.msra.mxu0 0.0
        %325 = vmatpush.msra.mxu0 0.0
        %326 = vmatpush.msra.mxu0 0.0
        %327 = vmatpush.msra.mxu0 0.0
        %328 = vmatpush.msra.mxu0 0.0
        %329 = vmatpush.msra.mxu0 0.0
        %330 = vmatpush.msra.mxu0 0.0
        %331 = vmatpush.msra.mxu0 0.0
        %332 = vmatpush.msra.mxu0 0.0
        %333 = vmatpush.msra.mxu0 0.0
        %334 = vmatpush.msra.mxu0 0.0
        %335 = vmatpush.msra.mxu0 %v240
        %336 = vmatpush.msra.mxu0 %v236
        %337 = vmatpush.msra.mxu0 %v232
        %338 = vmatpush.msra.mxu0 %v228
        %339 = vmatmul.f32.gmra.mxu0 %v254
        %v340 = vpop.f32.mrf.mxu0
        %v341 = vadd.f32 %v246, %v340
        %342 = vmatmul.f32.gmra.mxu0 %v257
        %v343 = vpop.f32.mrf.mxu0
        %v344 = vadd.f32 %v246, %v343
        %345 = vmatmul.f32.gmra.mxu0 %v260
        %v346 = vpop.f32.mrf.mxu0
        %v347 = vadd.f32 %v246, %v346
        %348 = vmatmul.f32.gmra.mxu0 %v263
        %v349 = vpop.f32.mrf.mxu0
        %v350 = vadd.f32 %v246, %v349
        %351 = vdwg.mxu0
        %352 = vmatpush.msra.mxu0 0.0
        %353 = vmatpush.msra.mxu0 0.0
        %354 = vmatpush.msra.mxu0 0.0
        %355 = vmatpush.msra.mxu0 0.0
        %356 = vmatpush.msra.mxu0 0.0
        %357 = vmatpush.msra.mxu0 0.0
        %358 = vmatpush.msra.mxu0 0.0
        %359 = vmatpush.msra.mxu0 0.0
        %360 = vmatpush.msra.mxu0 0.0
        %361 = vmatpush.msra.mxu0 0.0
        %362 = vmatpush.msra.mxu0 0.0
        %363 = vmatpush.msra.mxu0 0.0
        %364 = vmatpush.msra.mxu0 %v241
        %365 = vmatpush.msra.mxu0 %v237
        %366 = vmatpush.msra.mxu0 %v233
        %367 = vmatpush.msra.mxu0 %v229
        %368 = vmatmul.f32.gmra.mxu0 %v254
        %v369 = vpop.f32.mrf.mxu0
        %v370 = vadd.f32 %v247, %v369
        %371 = vmatmul.f32.gmra.mxu0 %v257
        %v372 = vpop.f32.mrf.mxu0
        %v373 = vadd.f32 %v247, %v372
        %374 = vmatmul.f32.gmra.mxu0 %v260
        %v375 = vpop.f32.mrf.mxu0
        %v376 = vadd.f32 %v247, %v375
        %377 = vmatmul.f32.gmra.mxu0 %v263
        %v378 = vpop.f32.mrf.mxu0
        %v379 = vadd.f32 %v247, %v378
        %380 = vdwg.mxu0
        %381 = vst [vmem:[#allocation4] sm:$0xff] %v283
        %382 = vst [vmem:[#allocation4 + $0x8] sm:$0xff] %v312
        %383 = vst [vmem:[#allocation4 + $0x10] sm:$0xff] %v341
        %384 = vst [vmem:[#allocation4 + $0x18] sm:$0xff] %v370
        %385 = vst [vmem:[#allocation4 + $0x20] sm:$0xff] %v286
        %386 = vst [vmem:[#allocation4 + $0x28] sm:$0xff] %v315
        %387 = vst [vmem:[#allocation4 + $0x30] sm:$0xff] %v344
        %388 = vst [vmem:[#allocation4 + $0x38] sm:$0xff] %v373
        %389 = vst [vmem:[#allocation4 + $0x40] sm:$0xff] %v289
        %390 = vst [vmem:[#allocation4 + $0x48] sm:$0xff] %v318
        %391 = vst [vmem:[#allocation4 + $0x50] sm:$0xff] %v347
        %392 = vst [vmem:[#allocation4 + $0x58] sm:$0xff] %v376
        %393 = vst [vmem:[#allocation4 + $0x60] sm:$0xff] %v292
        %394 = vst [vmem:[#allocation4 + $0x68] sm:$0xff] %v321
        %395 = vst [vmem:[#allocation4 + $0x70] sm:$0xff] %v350
        %396 = vst [vmem:[#allocation4 + $0x78] sm:$0xff] %v379
        %s397 = smul.u32 0, 4
        %s398 = smul.addr %s397, 8
        %s399 = scalar_lea.vmem [#allocation4], %s398
        %v400 = vld [vmem:[%s399] sm:$0xff]
        %v401 = vld [vmem:[%s399 + $0x8] sm:$0xff]
        %v402 = vld [vmem:[%s399 + $0x10] sm:$0xff]
        %v403 = vld [vmem:[%s399 + $0x18] sm:$0xff]
        %v404 = vld [vmem:[#allocation2] sm:$0xff]
        %v405 = vld [vmem:[#allocation5] sm:$0xff]
        %v406 = vld [vmem:[#allocation5 + $0x8] sm:$0xff]
        %v407 = vld [vmem:[#allocation5 + $0x10] sm:$0xff]
        %v408 = vld [vmem:[#allocation5 + $0x18] sm:$0xff]
        %v409 = vld [vmem:[#allocation5 + $0x20] sm:$0xff]
        %v410 = vld [vmem:[#allocation5 + $0x28] sm:$0xff]
        %v411 = vld [vmem:[#allocation5 + $0x30] sm:$0xff]
        %v412 = vld [vmem:[#allocation5 + $0x38] sm:$0xff]
        %v413 = vld [vmem:[#allocation5 + $0x40] sm:$0xff]
        %v414 = vld [vmem:[#allocation5 + $0x48] sm:$0xff]
        %v415 = vld [vmem:[#allocation5 + $0x50] sm:$0xff]
        %v416 = vld [vmem:[#allocation5 + $0x58] sm:$0xff]
        %v417 = vld [vmem:[#allocation5 + $0x60] sm:$0xff]
        %v418 = vld [vmem:[#allocation5 + $0x68] sm:$0xff]
        %v419 = vld [vmem:[#allocation5 + $0x70] sm:$0xff]
        %v420 = vld [vmem:[#allocation5 + $0x78] sm:$0xff]
        %v421 = vld [vmem:[#allocation5 + $0x80] sm:$0xff]
        %v422 = vld [vmem:[#allocation5 + $0x88] sm:$0xff]
        %v423 = vld [vmem:[#allocation5 + $0x90] sm:$0xff]
        %v424 = vld [vmem:[#allocation5 + $0x98] sm:$0xff]
        %v425 = vld [vmem:[#allocation5 + $0xa0] sm:$0xff]
        %v426 = vld [vmem:[#allocation5 + $0xa8] sm:$0xff]
        %v427 = vld [vmem:[#allocation5 + $0xb0] sm:$0xff]
        %v428 = vld [vmem:[#allocation5 + $0xb8] sm:$0xff]
        %v429 = vld [vmem:[#allocation5 + $0xc0] sm:$0xff]
        %v430 = vld [vmem:[#allocation5 + $0xc8] sm:$0xff]
        %v431 = vld [vmem:[#allocation5 + $0xd0] sm:$0xff]
        %v432 = vld [vmem:[#allocation5 + $0xd8] sm:$0xff]
        %v433 = vld [vmem:[#allocation5 + $0xe0] sm:$0xff]
        %v434 = vld [vmem:[#allocation5 + $0xe8] sm:$0xff]
        %v435 = vld [vmem:[#allocation5 + $0xf0] sm:$0xff]
        %v436 = vld [vmem:[#allocation5 + $0xf8] sm:$0xff]
        %v437 = vld [vmem:[#allocation5 + $0x100] sm:$0xff]
        %v438 = vld [vmem:[#allocation5 + $0x108] sm:$0xff]
        %v439 = vld [vmem:[#allocation5 + $0x110] sm:$0xff]
        %v440 = vld [vmem:[#allocation5 + $0x118] sm:$0xff]
        %v441 = vld [vmem:[#allocation5 + $0x120] sm:$0xff]
        %v442 = vld [vmem:[#allocation5 + $0x128] sm:$0xff]
        %v443 = vld [vmem:[#allocation5 + $0x130] sm:$0xff]
        %v444 = vld [vmem:[#allocation5 + $0x138] sm:$0xff]
        %v445 = vld [vmem:[#allocation5 + $0x140] sm:$0xff]
        %v446 = vld [vmem:[#allocation5 + $0x148] sm:$0xff]
        %v447 = vld [vmem:[#allocation5 + $0x150] sm:$0xff]
        %v448 = vld [vmem:[#allocation5 + $0x158] sm:$0xff]
        %v449 = vld [vmem:[#allocation5 + $0x160] sm:$0xff]
        %v450 = vld [vmem:[#allocation5 + $0x168] sm:$0xff]
        %v451 = vld [vmem:[#allocation5 + $0x170] sm:$0xff]
        %v452 = vld [vmem:[#allocation5 + $0x178] sm:$0xff]
        %v453 = vld [vmem:[#allocation5 + $0x180] sm:$0xff]
        %v454 = vld [vmem:[#allocation5 + $0x188] sm:$0xff]
        %v455 = vld [vmem:[#allocation5 + $0x190] sm:$0xff]
        %v456 = vld [vmem:[#allocation5 + $0x198] sm:$0xff]
        %v457 = vld [vmem:[#allocation5 + $0x1a0] sm:$0xff]
        %v458 = vld [vmem:[#allocation5 + $0x1a8] sm:$0xff]
        %v459 = vld [vmem:[#allocation5 + $0x1b0] sm:$0xff]
        %v460 = vld [vmem:[#allocation5 + $0x1b8] sm:$0xff]
        %v461 = vld [vmem:[#allocation5 + $0x1c0] sm:$0xff]
        %v462 = vld [vmem:[#allocation5 + $0x1c8] sm:$0xff]
        %v463 = vld [vmem:[#allocation5 + $0x1d0] sm:$0xff]
        %v464 = vld [vmem:[#allocation5 + $0x1d8] sm:$0xff]
        %v465 = vld [vmem:[#allocation5 + $0x1e0] sm:$0xff]
        %v466 = vld [vmem:[#allocation5 + $0x1e8] sm:$0xff]
        %v467 = vld [vmem:[#allocation5 + $0x1f0] sm:$0xff]
        %v468 = vld [vmem:[#allocation5 + $0x1f8] sm:$0xff]
        %469 = vmatpush.msra.mxu0 %v465
        %470 = vmatpush.msra.mxu0 %v461
        %471 = vmatpush.msra.mxu0 %v457
        %472 = vmatpush.msra.mxu0 %v453
        %473 = vmatpush.msra.mxu0 %v449
        %474 = vmatpush.msra.mxu0 %v445
        %475 = vmatpush.msra.mxu0 %v441
        %476 = vmatpush.msra.mxu0 %v437
        %477 = vmatpush.msra.mxu0 %v433
        %478 = vmatpush.msra.mxu0 %v429
        %479 = vmatpush.msra.mxu0 %v425
        %480 = vmatpush.msra.mxu0 %v421
        %481 = vmatpush.msra.mxu0 %v417
        %482 = vmatpush.msra.mxu0 %v413
        %483 = vmatpush.msra.mxu0 %v409
        %484 = vmatpush.msra.mxu0 %v405
        %485 = vmatmul.f32.gmra.mxu0 %v404
        %v486 = vpop.f32.mrf.mxu0
        %v487 = vadd.f32 0.0, %v486
        %488 = vdwg.mxu0
        %489 = vmatpush.msra.mxu0 %v466
        %490 = vmatpush.msra.mxu0 %v462
        %491 = vmatpush.msra.mxu0 %v458
        %492 = vmatpush.msra.mxu0 %v454
        %493 = vmatpush.msra.mxu0 %v450
        %494 = vmatpush.msra.mxu0 %v446
        %495 = vmatpush.msra.mxu0 %v442
        %496 = vmatpush.msra.mxu0 %v438
        %497 = vmatpush.msra.mxu0 %v434
        %498 = vmatpush.msra.mxu0 %v430
        %499 = vmatpush.msra.mxu0 %v426
        %500 = vmatpush.msra.mxu0 %v422
        %501 = vmatpush.msra.mxu0 %v418
        %502 = vmatpush.msra.mxu0 %v414
        %503 = vmatpush.msra.mxu0 %v410
        %504 = vmatpush.msra.mxu0 %v406
        %505 = vmatmul.f32.gmra.mxu0 %v404
        %v506 = vpop.f32.mrf.mxu0
        %v507 = vadd.f32 0.0, %v506
        %508 = vdwg.mxu0
        %509 = vmatpush.msra.mxu0 %v467
        %510 = vmatpush.msra.mxu0 %v463
        %511 = vmatpush.msra.mxu0 %v459
        %512 = vmatpush.msra.mxu0 %v455
        %513 = vmatpush.msra.mxu0 %v451
        %514 = vmatpush.msra.mxu0 %v447
        %515 = vmatpush.msra.mxu0 %v443
        %516 = vmatpush.msra.mxu0 %v439
        %517 = vmatpush.msra.mxu0 %v435
        %518 = vmatpush.msra.mxu0 %v431
        %519 = vmatpush.msra.mxu0 %v427
        %520 = vmatpush.msra.mxu0 %v423
        %521 = vmatpush.msra.mxu0 %v419
        %522 = vmatpush.msra.mxu0 %v415
        %523 = vmatpush.msra.mxu0 %v411
        %524 = vmatpush.msra.mxu0 %v407
        %525 = vmatmul.f32.gmra.mxu0 %v404
        %v526 = vpop.f32.mrf.mxu0
        %v527 = vadd.f32 0.0, %v526
        %528 = vdwg.mxu0
        %529 = vmatpush.msra.mxu0 %v468
        %530 = vmatpush.msra.mxu0 %v464
        %531 = vmatpush.msra.mxu0 %v460
        %532 = vmatpush.msra.mxu0 %v456
        %533 = vmatpush.msra.mxu0 %v452
        %534 = vmatpush.msra.mxu0 %v448
        %535 = vmatpush.msra.mxu0 %v444
        %536 = vmatpush.msra.mxu0 %v440
        %537 = vmatpush.msra.mxu0 %v436
        %538 = vmatpush.msra.mxu0 %v432
        %539 = vmatpush.msra.mxu0 %v428
        %540 = vmatpush.msra.mxu0 %v424
        %541 = vmatpush.msra.mxu0 %v420
        %542 = vmatpush.msra.mxu0 %v416
        %543 = vmatpush.msra.mxu0 %v412
        %544 = vmatpush.msra.mxu0 %v408
        %545 = vmatmul.f32.gmra.mxu0 %v404
        %v546 = vpop.f32.mrf.mxu0
        %v547 = vadd.f32 0.0, %v546
        %548 = vdwg.mxu0
        %v549 = vadd.f32 %v400, %v487
        %v550 = vadd.f32 %v401, %v507
        %v551 = vadd.f32 %v402, %v527
        %v552 = vadd.f32 %v403, %v547
        %v553 = vxor.u32 %v549, 2147483648
        %v554 = vxor.u32 %v550, 2147483648
        %v555 = vxor.u32 %v551, 2147483648
        %v556 = vmul.f32 %v553, 1.442695
        %v557 = vpow.pop %v556
        %v558 = vmul.f32 %v554, 1.442695
        %v559 = vpow.pop %v558
        %v560 = vmul.f32 %v555, 1.442695
        %v561 = vpow.pop %v560
        %v562 = vadd.f32 %v557, 1.0
        %v563 = vadd.f32 %v559, 1.0
        %v564 = vadd.f32 %v561, 1.0
        %v565 = vrcp.pop %v562
        %v566 = vmul.f32 %v562, %v565
        %v567 = vsub.f32 1.0, %v566
        %v568 = vmul.f32 %v565, %v567
        %v569 = vadd.f32 %v565, %v568
        %vm570 = vweird.f32 %v562
        %vm571 = vweird.f32 %v565
        %vm572 = vmor %vm570, %vm571
        %v573 = vsel %vm572, %v565, %v569
        %v574 = vand.u32 2147483647, %v562
        %vm575 = vcmp.eq.f32.partialorder %v574, 8.507059e+37
        %v576 = vand.u32 %v562, 2147483648
        %v577 = vor.u32 1.1754944e-38, %v576
        %v578 = vsel %vm575, %v577, %v573
        %v579 = vmul.f32 1.0, %v578
        %v580 = vrcp.pop %v563
        %v581 = vmul.f32 %v563, %v580
        %v582 = vsub.f32 1.0, %v581
        %v583 = vmul.f32 %v580, %v582
        %v584 = vadd.f32 %v580, %v583
        %vm585 = vweird.f32 %v563
        %vm586 = vweird.f32 %v580
        %vm587 = vmor %vm585, %vm586
        %v588 = vsel %vm587, %v580, %v584
        %v589 = vand.u32 2147483647, %v563
        %vm590 = vcmp.eq.f32.partialorder %v589, 8.507059e+37
        %v591 = vand.u32 %v563, 2147483648
        %v592 = vor.u32 1.1754944e-38, %v591
        %v593 = vsel %vm590, %v592, %v588
        %v594 = vmul.f32 1.0, %v593
        %v595 = vrcp.pop %v564
        %v596 = vmul.f32 %v564, %v595
        %v597 = vsub.f32 1.0, %v596
        %v598 = vmul.f32 %v595, %v597
        %v599 = vadd.f32 %v595, %v598
        %vm600 = vweird.f32 %v564
        %vm601 = vweird.f32 %v595
        %vm602 = vmor %vm600, %vm601
        %v603 = vsel %vm602, %v595, %v599
        %v604 = vand.u32 2147483647, %v564
        %vm605 = vcmp.eq.f32.partialorder %v604, 8.507059e+37
        %v606 = vand.u32 %v564, 2147483648
        %v607 = vor.u32 1.1754944e-38, %v606
        %v608 = vsel %vm605, %v607, %v603
        %v609 = vmul.f32 1.0, %v608
        %v610 = vtanh.pop %v552
        %v611 = vld [vmem:[#allocation3] sm:$0xff]
        %v612 = vmul.f32 %v594, %v611
        %v613 = vmul.f32 %v579, %v610
        %v614 = vadd.f32 %v612, %v613
        %v615 = vtanh.pop %v614
        %v616 = vmul.f32 %v609, %v615
        %617 = vst [vmem:[#allocation3] sm:$0xff] %v614
        %618 = vst [vmem:[#allocation2] sm:$0xff] %v616
        %619 = vst [vmem:[%s208] sm:$0xff] %v616
        %s620 = smul.u32 1, 4
        %s621 = smul.addr %s620, 8
        %s622 = scalar_lea.vmem [#allocation4], %s621
        %v623 = vld [vmem:[%s622] sm:$0xff]
        %v624 = vld [vmem:[%s622 + $0x8] sm:$0xff]
        %v625 = vld [vmem:[%s622 + $0x10] sm:$0xff]
        %v626 = vld [vmem:[%s622 + $0x18] sm:$0xff]
        %v627 = vld [vmem:[#allocation2] sm:$0xff]
        %v628 = vld [vmem:[#allocation5] sm:$0xff]
        %v629 = vld [vmem:[#allocation5 + $0x8] sm:$0xff]
        %v630 = vld [vmem:[#allocation5 + $0x10] sm:$0xff]
        %v631 = vld [vmem:[#allocation5 + $0x18] sm:$0xff]
        %v632 = vld [vmem:[#allocation5 + $0x20] sm:$0xff]
        %v633 = vld [vmem:[#allocation5 + $0x28] sm:$0xff]
        %v634 = vld [vmem:[#allocation5 + $0x30] sm:$0xff]
        %v635 = vld [vmem:[#allocation5 + $0x38] sm:$0xff]
        %v636 = vld [vmem:[#allocation5 + $0x40] sm:$0xff]
        %v637 = vld [vmem:[#allocation5 + $0x48] sm:$0xff]
        %v638 = vld [vmem:[#allocation5 + $0x50] sm:$0xff]
        %v639 = vld [vmem:[#allocation5 + $0x58] sm:$0xff]
        %v640 = vld [vmem:[#allocation5 + $0x60] sm:$0xff]
        %v641 = vld [vmem:[#allocation5 + $0x68] sm:$0xff]
        %v642 = vld [vmem:[#allocation5 + $0x70] sm:$0xff]
        %v643 = vld [vmem:[#allocation5 + $0x78] sm:$0xff]
        %v644 = vld [vmem:[#allocation5 + $0x80] sm:$0xff]
        %v645 = vld [vmem:[#allocation5 + $0x88] sm:$0xff]
        %v646 = vld [vmem:[#allocation5 + $0x90] sm:$0xff]
        %v647 = vld [vmem:[#allocation5 + $0x98] sm:$0xff]
        %v648 = vld [vmem:[#allocation5 + $0xa0] sm:$0xff]
        %v649 = vld [vmem:[#allocation5 + $0xa8] sm:$0xff]
        %v650 = vld [vmem:[#allocation5 + $0xb0] sm:$0xff]
        %v651 = vld [vmem:[#allocation5 + $0xb8] sm:$0xff]
        %v652 = vld [vmem:[#allocation5 + $0xc0] sm:$0xff]
        %v653 = vld [vmem:[#allocation5 + $0xc8] sm:$0xff]
        %v654 = vld [vmem:[#allocation5 + $0xd0] sm:$0xff]
        %v655 = vld [vmem:[#allocation5 + $0xd8] sm:$0xff]
        %v656 = vld [vmem:[#allocation5 + $0xe0] sm:$0xff]
        %v657 = vld [vmem:[#allocation5 + $0xe8] sm:$0xff]
        %v658 = vld [vmem:[#allocation5 + $0xf0] sm:$0xff]
        %v659 = vld [vmem:[#allocation5 + $0xf8] sm:$0xff]
        %v660 = vld [vmem:[#allocation5 + $0x100] sm:$0xff]
        %v661 = vld [vmem:[#allocation5 + $0x108] sm:$0xff]
        %v662 = vld [vmem:[#allocation5 + $0x110] sm:$0xff]
        %v663 = vld [vmem:[#allocation5 + $0x118] sm:$0xff]
        %v664 = vld [vmem:[#allocation5 + $0x120] sm:$0xff]
        %v665 = vld [vmem:[#allocation5 + $0x128] sm:$0xff]
        %v666 = vld [vmem:[#allocation5 + $0x130] sm:$0xff]
        %v667 = vld [vmem:[#allocation5 + $0x138] sm:$0xff]
        %v668 = vld [vmem:[#allocation5 + $0x140] sm:$0xff]
        %v669 = vld [vmem:[#allocation5 + $0x148] sm:$0xff]
        %v670 = vld [vmem:[#allocation5 + $0x150] sm:$0xff]
        %v671 = vld [vmem:[#allocation5 + $0x158] sm:$0xff]
        %v672 = vld [vmem:[#allocation5 + $0x160] sm:$0xff]
        %v673 = vld [vmem:[#allocation5 + $0x168] sm:$0xff]
        %v674 = vld [vmem:[#allocation5 + $0x170] sm:$0xff]
        %v675 = vld [vmem:[#allocation5 + $0x178] sm:$0xff]
        %v676 = vld [vmem:[#allocation5 + $0x180] sm:$0xff]
        %v677 = vld [vmem:[#allocation5 + $0x188] sm:$0xff]
        %v678 = vld [vmem:[#allocation5 + $0x190] sm:$0xff]
        %v679 = vld [vmem:[#allocation5 + $0x198] sm:$0xff]
        %v680 = vld [vmem:[#allocation5 + $0x1a0] sm:$0xff]
        %v681 = vld [vmem:[#allocation5 + $0x1a8] sm:$0xff]
        %v682 = vld [vmem:[#allocation5 + $0x1b0] sm:$0xff]
        %v683 = vld [vmem:[#allocation5 + $0x1b8] sm:$0xff]
        %v684 = vld [vmem:[#allocation5 + $0x1c0] sm:$0xff]
        %v685 = vld [vmem:[#allocation5 + $0x1c8] sm:$0xff]
        %v686 = vld [vmem:[#allocation5 + $0x1d0] sm:$0xff]
        %v687 = vld [vmem:[#allocation5 + $0x1d8] sm:$0xff]
        %v688 = vld [vmem:[#allocation5 + $0x1e0] sm:$0xff]
        %v689 = vld [vmem:[#allocation5 + $0x1e8] sm:$0xff]
        %v690 = vld [vmem:[#allocation5 + $0x1f0] sm:$0xff]
        %v691 = vld [vmem:[#allocation5 + $0x1f8] sm:$0xff]
        %692 = vmatpush.msra.mxu0 %v688
        %693 = vmatpush.msra.mxu0 %v684
        %694 = vmatpush.msra.mxu0 %v680
        %695 = vmatpush.msra.mxu0 %v676
        %696 = vmatpush.msra.mxu0 %v672
        %697 = vmatpush.msra.mxu0 %v668
        %698 = vmatpush.msra.mxu0 %v664
        %699 = vmatpush.msra.mxu0 %v660
        %700 = vmatpush.msra.mxu0 %v656
        %701 = vmatpush.msra.mxu0 %v652
        %702 = vmatpush.msra.mxu0 %v648
        %703 = vmatpush.msra.mxu0 %v644
        %704 = vmatpush.msra.mxu0 %v640
        %705 = vmatpush.msra.mxu0 %v636
        %706 = vmatpush.msra.mxu0 %v632
        %707 = vmatpush.msra.mxu0 %v628
        %708 = vmatmul.f32.gmra.mxu0 %v627
        %v709 = vpop.f32.mrf.mxu0
        %v710 = vadd.f32 0.0, %v709
        %711 = vdwg.mxu0
        %712 = vmatpush.msra.mxu0 %v689
        %713 = vmatpush.msra.mxu0 %v685
        %714 = vmatpush.msra.mxu0 %v681
        %715 = vmatpush.msra.mxu0 %v677
        %716 = vmatpush.msra.mxu0 %v673
        %717 = vmatpush.msra.mxu0 %v669
        %718 = vmatpush.msra.mxu0 %v665
        %719 = vmatpush.msra.mxu0 %v661
        %720 = vmatpush.msra.mxu0 %v657
        %721 = vmatpush.msra.mxu0 %v653
        %722 = vmatpush.msra.mxu0 %v649
        %723 = vmatpush.msra.mxu0 %v645
        %724 = vmatpush.msra.mxu0 %v641
        %725 = vmatpush.msra.mxu0 %v637
        %726 = vmatpush.msra.mxu0 %v633
        %727 = vmatpush.msra.mxu0 %v629
        %728 = vmatmul.f32.gmra.mxu0 %v627
        %v729 = vpop.f32.mrf.mxu0
        %v730 = vadd.f32 0.0, %v729
        %731 = vdwg.mxu0
        %732 = vmatpush.msra.mxu0 %v690
        %733 = vmatpush.msra.mxu0 %v686
        %734 = vmatpush.msra.mxu0 %v682
        %735 = vmatpush.msra.mxu0 %v678
        %736 = vmatpush.msra.mxu0 %v674
        %737 = vmatpush.msra.mxu0 %v670
        %738 = vmatpush.msra.mxu0 %v666
        %739 = vmatpush.msra.mxu0 %v662
        %740 = vmatpush.msra.mxu0 %v658
        %741 = vmatpush.msra.mxu0 %v654
        %742 = vmatpush.msra.mxu0 %v650
        %743 = vmatpush.msra.mxu0 %v646
        %744 = vmatpush.msra.mxu0 %v642
        %745 = vmatpush.msra.mxu0 %v638
        %746 = vmatpush.msra.mxu0 %v634
        %747 = vmatpush.msra.mxu0 %v630
        %748 = vmatmul.f32.gmra.mxu0 %v627
        %v749 = vpop.f32.mrf.mxu0
        %v750 = vadd.f32 0.0, %v749
        %751 = vdwg.mxu0
        %752 = vmatpush.msra.mxu0 %v691
        %753 = vmatpush.msra.mxu0 %v687
        %754 = vmatpush.msra.mxu0 %v683
        %755 = vmatpush.msra.mxu0 %v679
        %756 = vmatpush.msra.mxu0 %v675
        %757 = vmatpush.msra.mxu0 %v671
        %758 = vmatpush.msra.mxu0 %v667
        %759 = vmatpush.msra.mxu0 %v663
        %760 = vmatpush.msra.mxu0 %v659
        %761 = vmatpush.msra.mxu0 %v655
        %762 = vmatpush.msra.mxu0 %v651
        %763 = vmatpush.msra.mxu0 %v647
        %764 = vmatpush.msra.mxu0 %v643
        %765 = vmatpush.msra.mxu0 %v639
        %766 = vmatpush.msra.mxu0 %v635
        %767 = vmatpush.msra.mxu0 %v631
        %768 = vmatmul.f32.gmra.mxu0 %v627
        %v769 = vpop.f32.mrf.mxu0
        %v770 = vadd.f32 0.0, %v769
        %771 = vdwg.mxu0
        %v772 = vadd.f32 %v623, %v710
        %v773 = vadd.f32 %v624, %v730
        %v774 = vadd.f32 %v625, %v750
        %v775 = vadd.f32 %v626, %v770
        %v776 = vxor.u32 %v772, 2147483648
        %v777 = vxor.u32 %v773, 2147483648
        %v778 = vxor.u32 %v774, 2147483648
        %v779 = vmul.f32 %v776, 1.442695
        %v780 = vpow.pop %v779
        %v781 = vmul.f32 %v777, 1.442695
        %v782 = vpow.pop %v781
        %v783 = vmul.f32 %v778, 1.442695
        %v784 = vpow.pop %v783
        %v785 = vadd.f32 %v780, 1.0
        %v786 = vadd.f32 %v782, 1.0
        %v787 = vadd.f32 %v784, 1.0
        %v788 = vrcp.pop %v785
        %v789 = vmul.f32 %v785, %v788
        %v790 = vsub.f32 1.0, %v789
        %v791 = vmul.f32 %v788, %v790
        %v792 = vadd.f32 %v788, %v791
        %vm793 = vweird.f32 %v785
        %vm794 = vweird.f32 %v788
        %vm795 = vmor %vm793, %vm794
        %v796 = vsel %vm795, %v788, %v792
        %v797 = vand.u32 2147483647, %v785
        %vm798 = vcmp.eq.f32.partialorder %v797, 8.507059e+37
        %v799 = vand.u32 %v785, 2147483648
        %v800 = vor.u32 1.1754944e-38, %v799
        %v801 = vsel %vm798, %v800, %v796
        %v802 = vmul.f32 1.0, %v801
        %v803 = vrcp.pop %v786
        %v804 = vmul.f32 %v786, %v803
        %v805 = vsub.f32 1.0, %v804
        %v806 = vmul.f32 %v803, %v805
        %v807 = vadd.f32 %v803, %v806
        %vm808 = vweird.f32 %v786
        %vm809 = vweird.f32 %v803
        %vm810 = vmor %vm808, %vm809
        %v811 = vsel %vm810, %v803, %v807
        %v812 = vand.u32 2147483647, %v786
        %vm813 = vcmp.eq.f32.partialorder %v812, 8.507059e+37
        %v814 = vand.u32 %v786, 2147483648
        %v815 = vor.u32 1.1754944e-38, %v814
        %v816 = vsel %vm813, %v815, %v811
        %v817 = vmul.f32 1.0, %v816
        %v818 = vrcp.pop %v787
        %v819 = vmul.f32 %v787, %v818
        %v820 = vsub.f32 1.0, %v819
        %v821 = vmul.f32 %v818, %v820
        %v822 = vadd.f32 %v818, %v821
        %vm823 = vweird.f32 %v787
        %vm824 = vweird.f32 %v818
        %vm825 = vmor %vm823, %vm824
        %v826 = vsel %vm825, %v818, %v822
        %v827 = vand.u32 2147483647, %v787
        %vm828 = vcmp.eq.f32.partialorder %v827, 8.507059e+37
        %v829 = vand.u32 %v787, 2147483648
        %v830 = vor.u32 1.1754944e-38, %v829
        %v831 = vsel %vm828, %v830, %v826
        %v832 = vmul.f32 1.0, %v831
        %v833 = vtanh.pop %v775
        %v834 = vld [vmem:[#allocation3] sm:$0xff]
        %v835 = vmul.f32 %v817, %v834
        %v836 = vmul.f32 %v802, %v833
        %v837 = vadd.f32 %v835, %v836
        %v838 = vtanh.pop %v837
        %v839 = vmul.f32 %v832, %v838
        %840 = vst [vmem:[#allocation3] sm:$0xff] %v837
        %841 = vst [vmem:[#allocation2] sm:$0xff] %v839
        %s842 = scalar_lea.vmem %s208, 8 [#allocation8]
        %843 = vst [vmem:[%s842] sm:$0xff] %v839
        %s844 = smul.u32 2, 4
        %s845 = smul.addr %s844, 8
        %s846 = scalar_lea.vmem [#allocation4], %s845
        %v847 = vld [vmem:[%s846] sm:$0xff]
        %v848 = vld [vmem:[%s846 + $0x8] sm:$0xff]
        %v849 = vld [vmem:[%s846 + $0x10] sm:$0xff]
        %v850 = vld [vmem:[%s846 + $0x18] sm:$0xff]
        %v851 = vld [vmem:[#allocation2] sm:$0xff]
        %v852 = vld [vmem:[#allocation5] sm:$0xff]
        %v853 = vld [vmem:[#allocation5 + $0x8] sm:$0xff]
        %v854 = vld [vmem:[#allocation5 + $0x10] sm:$0xff]
        %v855 = vld [vmem:[#allocation5 + $0x18] sm:$0xff]
        %v856 = vld [vmem:[#allocation5 + $0x20] sm:$0xff]
        %v857 = vld [vmem:[#allocation5 + $0x28] sm:$0xff]
        %v858 = vld [vmem:[#allocation5 + $0x30] sm:$0xff]
        %v859 = vld [vmem:[#allocation5 + $0x38] sm:$0xff]
        %v860 = vld [vmem:[#allocation5 + $0x40] sm:$0xff]
        %v861 = vld [vmem:[#allocation5 + $0x48] sm:$0xff]
        %v862 = vld [vmem:[#allocation5 + $0x50] sm:$0xff]
        %v863 = vld [vmem:[#allocation5 + $0x58] sm:$0xff]
        %v864 = vld [vmem:[#allocation5 + $0x60] sm:$0xff]
        %v865 = vld [vmem:[#allocation5 + $0x68] sm:$0xff]
        %v866 = vld [vmem:[#allocation5 + $0x70] sm:$0xff]
        %v867 = vld [vmem:[#allocation5 + $0x78] sm:$0xff]
        %v868 = vld [vmem:[#allocation5 + $0x80] sm:$0xff]
        %v869 = vld [vmem:[#allocation5 + $0x88] sm:$0xff]
        %v870 = vld [vmem:[#allocation5 + $0x90] sm:$0xff]
        %v871 = vld [vmem:[#allocation5 + $0x98] sm:$0xff]
        %v872 = vld [vmem:[#allocation5 + $0xa0] sm:$0xff]
        %v873 = vld [vmem:[#allocation5 + $0xa8] sm:$0xff]
        %v874 = vld [vmem:[#allocation5 + $0xb0] sm:$0xff]
        %v875 = vld [vmem:[#allocation5 + $0xb8] sm:$0xff]
        %v876 = vld [vmem:[#allocation5 + $0xc0] sm:$0xff]
        %v877 = vld [vmem:[#allocation5 + $0xc8] sm:$0xff]
        %v878 = vld [vmem:[#allocation5 + $0xd0] sm:$0xff]
        %v879 = vld [vmem:[#allocation5 + $0xd8] sm:$0xff]
        %v880 = vld [vmem:[#allocation5 + $0xe0] sm:$0xff]
        %v881 = vld [vmem:[#allocation5 + $0xe8] sm:$0xff]
        %v882 = vld [vmem:[#allocation5 + $0xf0] sm:$0xff]
        %v883 = vld [vmem:[#allocation5 + $0xf8] sm:$0xff]
        %v884 = vld [vmem:[#allocation5 + $0x100] sm:$0xff]
        %v885 = vld [vmem:[#allocation5 + $0x108] sm:$0xff]
        %v886 = vld [vmem:[#allocation5 + $0x110] sm:$0xff]
        %v887 = vld [vmem:[#allocation5 + $0x118] sm:$0xff]
        %v888 = vld [vmem:[#allocation5 + $0x120] sm:$0xff]
        %v889 = vld [vmem:[#allocation5 + $0x128] sm:$0xff]
        %v890 = vld [vmem:[#allocation5 + $0x130] sm:$0xff]
        %v891 = vld [vmem:[#allocation5 + $0x138] sm:$0xff]
        %v892 = vld [vmem:[#allocation5 + $0x140] sm:$0xff]
        %v893 = vld [vmem:[#allocation5 + $0x148] sm:$0xff]
        %v894 = vld [vmem:[#allocation5 + $0x150] sm:$0xff]
        %v895 = vld [vmem:[#allocation5 + $0x158] sm:$0xff]
        %v896 = vld [vmem:[#allocation5 + $0x160] sm:$0xff]
        %v897 = vld [vmem:[#allocation5 + $0x168] sm:$0xff]
        %v898 = vld [vmem:[#allocation5 + $0x170] sm:$0xff]
        %v899 = vld [vmem:[#allocation5 + $0x178] sm:$0xff]
        %v900 = vld [vmem:[#allocation5 + $0x180] sm:$0xff]
        %v901 = vld [vmem:[#allocation5 + $0x188] sm:$0xff]
        %v902 = vld [vmem:[#allocation5 + $0x190] sm:$0xff]
        %v903 = vld [vmem:[#allocation5 + $0x198] sm:$0xff]
        %v904 = vld [vmem:[#allocation5 + $0x1a0] sm:$0xff]
        %v905 = vld [vmem:[#allocation5 + $0x1a8] sm:$0xff]
        %v906 = vld [vmem:[#allocation5 + $0x1b0] sm:$0xff]
        %v907 = vld [vmem:[#allocation5 + $0x1b8] sm:$0xff]
        %v908 = vld [vmem:[#allocation5 + $0x1c0] sm:$0xff]
        %v909 = vld [vmem:[#allocation5 + $0x1c8] sm:$0xff]
        %v910 = vld [vmem:[#allocation5 + $0x1d0] sm:$0xff]
        %v911 = vld [vmem:[#allocation5 + $0x1d8] sm:$0xff]
        %v912 = vld [vmem:[#allocation5 + $0x1e0] sm:$0xff]
        %v913 = vld [vmem:[#allocation5 + $0x1e8] sm:$0xff]
        %v914 = vld [vmem:[#allocation5 + $0x1f0] sm:$0xff]
        %v915 = vld [vmem:[#allocation5 + $0x1f8] sm:$0xff]
        %916 = vmatpush.msra.mxu0 %v912
        %917 = vmatpush.msra.mxu0 %v908
        %918 = vmatpush.msra.mxu0 %v904
        %919 = vmatpush.msra.mxu0 %v900
        %920 = vmatpush.msra.mxu0 %v896
        %921 = vmatpush.msra.mxu0 %v892
        %922 = vmatpush.msra.mxu0 %v888
        %923 = vmatpush.msra.mxu0 %v884
        %924 = vmatpush.msra.mxu0 %v880
        %925 = vmatpush.msra.mxu0 %v876
        %926 = vmatpush.msra.mxu0 %v872
        %927 = vmatpush.msra.mxu0 %v868
        %928 = vmatpush.msra.mxu0 %v864
        %929 = vmatpush.msra.mxu0 %v860
        %930 = vmatpush.msra.mxu0 %v856
        %931 = vmatpush.msra.mxu0 %v852
        %932 = vmatmul.f32.gmra.mxu0 %v851
        %v933 = vpop.f32.mrf.mxu0
        %v934 = vadd.f32 0.0, %v933
        %935 = vdwg.mxu0
        %936 = vmatpush.msra.mxu0 %v913
        %937 = vmatpush.msra.mxu0 %v909
        %938 = vmatpush.msra.mxu0 %v905
        %939 = vmatpush.msra.mxu0 %v901
        %940 = vmatpush.msra.mxu0 %v897
        %941 = vmatpush.msra.mxu0 %v893
        %942 = vmatpush.msra.mxu0 %v889
        %943 = vmatpush.msra.mxu0 %v885
        %944 = vmatpush.msra.mxu0 %v881
        %945 = vmatpush.msra.mxu0 %v877
        %946 = vmatpush.msra.mxu0 %v873
        %947 = vmatpush.msra.mxu0 %v869
        %948 = vmatpush.msra.mxu0 %v865
        %949 = vmatpush.msra.mxu0 %v861
        %950 = vmatpush.msra.mxu0 %v857
        %951 = vmatpush.msra.mxu0 %v853
        %952 = vmatmul.f32.gmra.mxu0 %v851
        %v953 = vpop.f32.mrf.mxu0
        %v954 = vadd.f32 0.0, %v953
        %955 = vdwg.mxu0
        %956 = vmatpush.msra.mxu0 %v914
        %957 = vmatpush.msra.mxu0 %v910
        %958 = vmatpush.msra.mxu0 %v906
        %959 = vmatpush.msra.mxu0 %v902
        %960 = vmatpush.msra.mxu0 %v898
        %961 = vmatpush.msra.mxu0 %v894
        %962 = vmatpush.msra.mxu0 %v890
        %963 = vmatpush.msra.mxu0 %v886
        %964 = vmatpush.msra.mxu0 %v882
        %965 = vmatpush.msra.mxu0 %v878
        %966 = vmatpush.msra.mxu0 %v874
        %967 = vmatpush.msra.mxu0 %v870
        %968 = vmatpush.msra.mxu0 %v866
        %969 = vmatpush.msra.mxu0 %v862
        %970 = vmatpush.msra.mxu0 %v858
        %971 = vmatpush.msra.mxu0 %v854
        %972 = vmatmul.f32.gmra.mxu0 %v851
        %v973 = vpop.f32.mrf.mxu0
        %v974 = vadd.f32 0.0, %v973
        %975 = vdwg.mxu0
        %976 = vmatpush.msra.mxu0 %v915
        %977 = vmatpush.msra.mxu0 %v911
        %978 = vmatpush.msra.mxu0 %v907
        %979 = vmatpush.msra.mxu0 %v903
        %980 = vmatpush.msra.mxu0 %v899
        %981 = vmatpush.msra.mxu0 %v895
        %982 = vmatpush.msra.mxu0 %v891
        %983 = vmatpush.msra.mxu0 %v887
        %984 = vmatpush.msra.mxu0 %v883
        %985 = vmatpush.msra.mxu0 %v879
        %986 = vmatpush.msra.mxu0 %v875
        %987 = vmatpush.msra.mxu0 %v871
        %988 = vmatpush.msra.mxu0 %v867
        %989 = vmatpush.msra.mxu0 %v863
        %990 = vmatpush.msra.mxu0 %v859
        %991 = vmatpush.msra.mxu0 %v855
        %992 = vmatmul.f32.gmra.mxu0 %v851
        %v993 = vpop.f32.mrf.mxu0
        %v994 = vadd.f32 0.0, %v993
        %995 = vdwg.mxu0
        %v996 = vadd.f32 %v847, %v934
        %v997 = vadd.f32 %v848, %v954
        %v998 = vadd.f32 %v849, %v974
        %v999 = vadd.f32 %v850, %v994
        %v1000 = vxor.u32 %v996, 2147483648
        %v1001 = vxor.u32 %v997, 2147483648
        %v1002 = vxor.u32 %v998, 2147483648
        %v1003 = vmul.f32 %v1000, 1.442695
        %v1004 = vpow.pop %v1003
        %v1005 = vmul.f32 %v1001, 1.442695
        %v1006 = vpow.pop %v1005
        %v1007 = vmul.f32 %v1002, 1.442695
        %v1008 = vpow.pop %v1007
        %v1009 = vadd.f32 %v1004, 1.0
        %v1010 = vadd.f32 %v1006, 1.0
        %v1011 = vadd.f32 %v1008, 1.0
        %v1012 = vrcp.pop %v1009
        %v1013 = vmul.f32 %v1009, %v1012
        %v1014 = vsub.f32 1.0, %v1013
        %v1015 = vmul.f32 %v1012, %v1014
        %v1016 = vadd.f32 %v1012, %v1015
        %vm1017 = vweird.f32 %v1009
        %vm1018 = vweird.f32 %v1012
        %vm1019 = vmor %vm1017, %vm1018
        %v1020 = vsel %vm1019, %v1012, %v1016
        %v1021 = vand.u32 2147483647, %v1009
        %vm1022 = vcmp.eq.f32.partialorder %v1021, 8.507059e+37
        %v1023 = vand.u32 %v1009, 2147483648
        %v1024 = vor.u32 1.1754944e-38, %v1023
        %v1025 = vsel %vm1022, %v1024, %v1020
        %v1026 = vmul.f32 1.0, %v1025
        %v1027 = vrcp.pop %v1010
        %v1028 = vmul.f32 %v1010, %v1027
        %v1029 = vsub.f32 1.0, %v1028
        %v1030 = vmul.f32 %v1027, %v1029
        %v1031 = vadd.f32 %v1027, %v1030
        %vm1032 = vweird.f32 %v1010
        %vm1033 = vweird.f32 %v1027
        %vm1034 = vmor %vm1032, %vm1033
        %v1035 = vsel %vm1034, %v1027, %v1031
        %v1036 = vand.u32 2147483647, %v1010
        %vm1037 = vcmp.eq.f32.partialorder %v1036, 8.507059e+37
        %v1038 = vand.u32 %v1010, 2147483648
        %v1039 = vor.u32 1.1754944e-38, %v1038
        %v1040 = vsel %vm1037, %v1039, %v1035
        %v1041 = vmul.f32 1.0, %v1040
        %v1042 = vrcp.pop %v1011
        %v1043 = vmul.f32 %v1011, %v1042
        %v1044 = vsub.f32 1.0, %v1043
        %v1045 = vmul.f32 %v1042, %v1044
        %v1046 = vadd.f32 %v1042, %v1045
        %vm1047 = vweird.f32 %v1011
        %vm1048 = vweird.f32 %v1042
        %vm1049 = vmor %vm1047, %vm1048
        %v1050 = vsel %vm1049, %v1042, %v1046
        %v1051 = vand.u32 2147483647, %v1011
        %vm1052 = vcmp.eq.f32.partialorder %v1051, 8.507059e+37
        %v1053 = vand.u32 %v1011, 2147483648
        %v1054 = vor.u32 1.1754944e-38, %v1053
        %v1055 = vsel %vm1052, %v1054, %v1050
        %v1056 = vmul.f32 1.0, %v1055
        %v1057 = vtanh.pop %v999
        %v1058 = vld [vmem:[#allocation3] sm:$0xff]
        %v1059 = vmul.f32 %v1041, %v1058
        %v1060 = vmul.f32 %v1026, %v1057
        %v1061 = vadd.f32 %v1059, %v1060
        %v1062 = vtanh.pop %v1061
        %v1063 = vmul.f32 %v1056, %v1062
        %1064 = vst [vmem:[#allocation3] sm:$0xff] %v1061
        %1065 = vst [vmem:[#allocation2] sm:$0xff] %v1063
        %s1066 = scalar_lea.vmem %s208, 16 [#allocation8]
        %1067 = vst [vmem:[%s1066] sm:$0xff] %v1063
        %s1068 = smul.u32 3, 4
        %s1069 = smul.addr %s1068, 8
        %s1070 = scalar_lea.vmem [#allocation4], %s1069
        %v1071 = vld [vmem:[%s1070] sm:$0xff]
        %v1072 = vld [vmem:[%s1070 + $0x8] sm:$0xff]
        %v1073 = vld [vmem:[%s1070 + $0x10] sm:$0xff]
        %v1074 = vld [vmem:[%s1070 + $0x18] sm:$0xff]
        %v1075 = vld [vmem:[#allocation2] sm:$0xff]
        %v1076 = vld [vmem:[#allocation5] sm:$0xff]
        %v1077 = vld [vmem:[#allocation5 + $0x8] sm:$0xff]
        %v1078 = vld [vmem:[#allocation5 + $0x10] sm:$0xff]
        %v1079 = vld [vmem:[#allocation5 + $0x18] sm:$0xff]
        %v1080 = vld [vmem:[#allocation5 + $0x20] sm:$0xff]
        %v1081 = vld [vmem:[#allocation5 + $0x28] sm:$0xff]
        %v1082 = vld [vmem:[#allocation5 + $0x30] sm:$0xff]
        %v1083 = vld [vmem:[#allocation5 + $0x38] sm:$0xff]
        %v1084 = vld [vmem:[#allocation5 + $0x40] sm:$0xff]
        %v1085 = vld [vmem:[#allocation5 + $0x48] sm:$0xff]
        %v1086 = vld [vmem:[#allocation5 + $0x50] sm:$0xff]
        %v1087 = vld [vmem:[#allocation5 + $0x58] sm:$0xff]
        %v1088 = vld [vmem:[#allocation5 + $0x60] sm:$0xff]
        %v1089 = vld [vmem:[#allocation5 + $0x68] sm:$0xff]
        %v1090 = vld [vmem:[#allocation5 + $0x70] sm:$0xff]
        %v1091 = vld [vmem:[#allocation5 + $0x78] sm:$0xff]
        %v1092 = vld [vmem:[#allocation5 + $0x80] sm:$0xff]
        %v1093 = vld [vmem:[#allocation5 + $0x88] sm:$0xff]
        %v1094 = vld [vmem:[#allocation5 + $0x90] sm:$0xff]
        %v1095 = vld [vmem:[#allocation5 + $0x98] sm:$0xff]
        %v1096 = vld [vmem:[#allocation5 + $0xa0] sm:$0xff]
        %v1097 = vld [vmem:[#allocation5 + $0xa8] sm:$0xff]
        %v1098 = vld [vmem:[#allocation5 + $0xb0] sm:$0xff]
        %v1099 = vld [vmem:[#allocation5 + $0xb8] sm:$0xff]
        %v1100 = vld [vmem:[#allocation5 + $0xc0] sm:$0xff]
        %v1101 = vld [vmem:[#allocation5 + $0xc8] sm:$0xff]
        %v1102 = vld [vmem:[#allocation5 + $0xd0] sm:$0xff]
        %v1103 = vld [vmem:[#allocation5 + $0xd8] sm:$0xff]
        %v1104 = vld [vmem:[#allocation5 + $0xe0] sm:$0xff]
        %v1105 = vld [vmem:[#allocation5 + $0xe8] sm:$0xff]
        %v1106 = vld [vmem:[#allocation5 + $0xf0] sm:$0xff]
        %v1107 = vld [vmem:[#allocation5 + $0xf8] sm:$0xff]
        %v1108 = vld [vmem:[#allocation5 + $0x100] sm:$0xff]
        %v1109 = vld [vmem:[#allocation5 + $0x108] sm:$0xff]
        %v1110 = vld [vmem:[#allocation5 + $0x110] sm:$0xff]
        %v1111 = vld [vmem:[#allocation5 + $0x118] sm:$0xff]
        %v1112 = vld [vmem:[#allocation5 + $0x120] sm:$0xff]
        %v1113 = vld [vmem:[#allocation5 + $0x128] sm:$0xff]
        %v1114 = vld [vmem:[#allocation5 + $0x130] sm:$0xff]
        %v1115 = vld [vmem:[#allocation5 + $0x138] sm:$0xff]
        %v1116 = vld [vmem:[#allocation5 + $0x140] sm:$0xff]
        %v1117 = vld [vmem:[#allocation5 + $0x148] sm:$0xff]
        %v1118 = vld [vmem:[#allocation5 + $0x150] sm:$0xff]
        %v1119 = vld [vmem:[#allocation5 + $0x158] sm:$0xff]
        %v1120 = vld [vmem:[#allocation5 + $0x160] sm:$0xff]
        %v1121 = vld [vmem:[#allocation5 + $0x168] sm:$0xff]
        %v1122 = vld [vmem:[#allocation5 + $0x170] sm:$0xff]
        %v1123 = vld [vmem:[#allocation5 + $0x178] sm:$0xff]
        %v1124 = vld [vmem:[#allocation5 + $0x180] sm:$0xff]
        %v1125 = vld [vmem:[#allocation5 + $0x188] sm:$0xff]
        %v1126 = vld [vmem:[#allocation5 + $0x190] sm:$0xff]
        %v1127 = vld [vmem:[#allocation5 + $0x198] sm:$0xff]
        %v1128 = vld [vmem:[#allocation5 + $0x1a0] sm:$0xff]
        %v1129 = vld [vmem:[#allocation5 + $0x1a8] sm:$0xff]
        %v1130 = vld [vmem:[#allocation5 + $0x1b0] sm:$0xff]
        %v1131 = vld [vmem:[#allocation5 + $0x1b8] sm:$0xff]
        %v1132 = vld [vmem:[#allocation5 + $0x1c0] sm:$0xff]
        %v1133 = vld [vmem:[#allocation5 + $0x1c8] sm:$0xff]
        %v1134 = vld [vmem:[#allocation5 + $0x1d0] sm:$0xff]
        %v1135 = vld [vmem:[#allocation5 + $0x1d8] sm:$0xff]
        %v1136 = vld [vmem:[#allocation5 + $0x1e0] sm:$0xff]
        %v1137 = vld [vmem:[#allocation5 + $0x1e8] sm:$0xff]
        %v1138 = vld [vmem:[#allocation5 + $0x1f0] sm:$0xff]
        %v1139 = vld [vmem:[#allocation5 + $0x1f8] sm:$0xff]
        %1140 = vmatpush.msra.mxu0 %v1136
        %1141 = vmatpush.msra.mxu0 %v1132
        %1142 = vmatpush.msra.mxu0 %v1128
        %1143 = vmatpush.msra.mxu0 %v1124
        %1144 = vmatpush.msra.mxu0 %v1120
        %1145 = vmatpush.msra.mxu0 %v1116
        %1146 = vmatpush.msra.mxu0 %v1112
        %1147 = vmatpush.msra.mxu0 %v1108
        %1148 = vmatpush.msra.mxu0 %v1104
        %1149 = vmatpush.msra.mxu0 %v1100
        %1150 = vmatpush.msra.mxu0 %v1096
        %1151 = vmatpush.msra.mxu0 %v1092
        %1152 = vmatpush.msra.mxu0 %v1088
        %1153 = vmatpush.msra.mxu0 %v1084
        %1154 = vmatpush.msra.mxu0 %v1080
        %1155 = vmatpush.msra.mxu0 %v1076
        %1156 = vmatmul.f32.gmra.mxu0 %v1075
        %v1157 = vpop.f32.mrf.mxu0
        %v1158 = vadd.f32 0.0, %v1157
        %1159 = vdwg.mxu0
        %1160 = vmatpush.msra.mxu0 %v1137
        %1161 = vmatpush.msra.mxu0 %v1133
        %1162 = vmatpush.msra.mxu0 %v1129
        %1163 = vmatpush.msra.mxu0 %v1125
        %1164 = vmatpush.msra.mxu0 %v1121
        %1165 = vmatpush.msra.mxu0 %v1117
        %1166 = vmatpush.msra.mxu0 %v1113
        %1167 = vmatpush.msra.mxu0 %v1109
        %1168 = vmatpush.msra.mxu0 %v1105
        %1169 = vmatpush.msra.mxu0 %v1101
        %1170 = vmatpush.msra.mxu0 %v1097
        %1171 = vmatpush.msra.mxu0 %v1093
        %1172 = vmatpush.msra.mxu0 %v1089
        %1173 = vmatpush.msra.mxu0 %v1085
        %1174 = vmatpush.msra.mxu0 %v1081
        %1175 = vmatpush.msra.mxu0 %v1077
        %1176 = vmatmul.f32.gmra.mxu0 %v1075
        %v1177 = vpop.f32.mrf.mxu0
        %v1178 = vadd.f32 0.0, %v1177
        %1179 = vdwg.mxu0
        %1180 = vmatpush.msra.mxu0 %v1138
        %1181 = vmatpush.msra.mxu0 %v1134
        %1182 = vmatpush.msra.mxu0 %v1130
        %1183 = vmatpush.msra.mxu0 %v1126
        %1184 = vmatpush.msra.mxu0 %v1122
        %1185 = vmatpush.msra.mxu0 %v1118
        %1186 = vmatpush.msra.mxu0 %v1114
        %1187 = vmatpush.msra.mxu0 %v1110
        %1188 = vmatpush.msra.mxu0 %v1106
        %1189 = vmatpush.msra.mxu0 %v1102
        %1190 = vmatpush.msra.mxu0 %v1098
        %1191 = vmatpush.msra.mxu0 %v1094
        %1192 = vmatpush.msra.mxu0 %v1090
        %1193 = vmatpush.msra.mxu0 %v1086
        %1194 = vmatpush.msra.mxu0 %v1082
        %1195 = vmatpush.msra.mxu0 %v1078
        %1196 = vmatmul.f32.gmra.mxu0 %v1075
        %v1197 = vpop.f32.mrf.mxu0
        %v1198 = vadd.f32 0.0, %v1197
        %1199 = vdwg.mxu0
        %1200 = vmatpush.msra.mxu0 %v1139
        %1201 = vmatpush.msra.mxu0 %v1135
        %1202 = vmatpush.msra.mxu0 %v1131
        %1203 = vmatpush.msra.mxu0 %v1127
        %1204 = vmatpush.msra.mxu0 %v1123
        %1205 = vmatpush.msra.mxu0 %v1119
        %1206 = vmatpush.msra.mxu0 %v1115
        %1207 = vmatpush.msra.mxu0 %v1111
        %1208 = vmatpush.msra.mxu0 %v1107
        %1209 = vmatpush.msra.mxu0 %v1103
        %1210 = vmatpush.msra.mxu0 %v1099
        %1211 = vmatpush.msra.mxu0 %v1095
        %1212 = vmatpush.msra.mxu0 %v1091
        %1213 = vmatpush.msra.mxu0 %v1087
        %1214 = vmatpush.msra.mxu0 %v1083
        %1215 = vmatpush.msra.mxu0 %v1079
        %1216 = vmatmul.f32.gmra.mxu0 %v1075
        %v1217 = vpop.f32.mrf.mxu0
        %v1218 = vadd.f32 0.0, %v1217
        %1219 = vdwg.mxu0
        %v1220 = vadd.f32 %v1071, %v1158
        %v1221 = vadd.f32 %v1072, %v1178
        %v1222 = vadd.f32 %v1073, %v1198
        %v1223 = vadd.f32 %v1074, %v1218
        %v1224 = vxor.u32 %v1220, 2147483648
        %v1225 = vxor.u32 %v1221, 2147483648
        %v1226 = vxor.u32 %v1222, 2147483648
        %v1227 = vmul.f32 %v1224, 1.442695
        %v1228 = vpow.pop %v1227
        %v1229 = vmul.f32 %v1225, 1.442695
        %v1230 = vpow.pop %v1229
        %v1231 = vmul.f32 %v1226, 1.442695
        %v1232 = vpow.pop %v1231
        %v1233 = vadd.f32 %v1228, 1.0
        %v1234 = vadd.f32 %v1230, 1.0
        %v1235 = vadd.f32 %v1232, 1.0
        %v1236 = vrcp.pop %v1233
        %v1237 = vmul.f32 %v1233, %v1236
        %v1238 = vsub.f32 1.0, %v1237
        %v1239 = vmul.f32 %v1236, %v1238
        %v1240 = vadd.f32 %v1236, %v1239
        %vm1241 = vweird.f32 %v1233
        %vm1242 = vweird.f32 %v1236
        %vm1243 = vmor %vm1241, %vm1242
        %v1244 = vsel %vm1243, %v1236, %v1240
        %v1245 = vand.u32 2147483647, %v1233
        %vm1246 = vcmp.eq.f32.partialorder %v1245, 8.507059e+37
        %v1247 = vand.u32 %v1233, 2147483648
        %v1248 = vor.u32 1.1754944e-38, %v1247
        %v1249 = vsel %vm1246, %v1248, %v1244
        %v1250 = vmul.f32 1.0, %v1249
        %v1251 = vrcp.pop %v1234
        %v1252 = vmul.f32 %v1234, %v1251
        %v1253 = vsub.f32 1.0, %v1252
        %v1254 = vmul.f32 %v1251, %v1253
        %v1255 = vadd.f32 %v1251, %v1254
        %vm1256 = vweird.f32 %v1234
        %vm1257 = vweird.f32 %v1251
        %vm1258 = vmor %vm1256, %vm1257
        %v1259 = vsel %vm1258, %v1251, %v1255
        %v1260 = vand.u32 2147483647, %v1234
        %vm1261 = vcmp.eq.f32.partialorder %v1260, 8.507059e+37
        %v1262 = vand.u32 %v1234, 2147483648
        %v1263 = vor.u32 1.1754944e-38, %v1262
        %v1264 = vsel %vm1261, %v1263, %v1259
        %v1265 = vmul.f32 1.0, %v1264
        %v1266 = vrcp.pop %v1235
        %v1267 = vmul.f32 %v1235, %v1266
        %v1268 = vsub.f32 1.0, %v1267
        %v1269 = vmul.f32 %v1266, %v1268
        %v1270 = vadd.f32 %v1266, %v1269
        %vm1271 = vweird.f32 %v1235
        %vm1272 = vweird.f32 %v1266
        %vm1273 = vmor %vm1271, %vm1272
        %v1274 = vsel %vm1273, %v1266, %v1270
        %v1275 = vand.u32 2147483647, %v1235
        %vm1276 = vcmp.eq.f32.partialorder %v1275, 8.507059e+37
        %v1277 = vand.u32 %v1235, 2147483648
        %v1278 = vor.u32 1.1754944e-38, %v1277
        %v1279 = vsel %vm1276, %v1278, %v1274
        %v1280 = vmul.f32 1.0, %v1279
        %v1281 = vtanh.pop %v1223
        %v1282 = vld [vmem:[#allocation3] sm:$0xff]
        %v1283 = vmul.f32 %v1265, %v1282
        %v1284 = vmul.f32 %v1250, %v1281
        %v1285 = vadd.f32 %v1283, %v1284
        %v1286 = vtanh.pop %v1285
        %v1287 = vmul.f32 %v1280, %v1286
        %1288 = vst [vmem:[#allocation3] sm:$0xff] %v1285
        %1289 = vst [vmem:[#allocation2] sm:$0xff] %v1287
        %s1290 = scalar_lea.vmem %s208, 24 [#allocation8]
        %1291 = vst [vmem:[%s1290] sm:$0xff] %v1287
        %s1292 = sand.u32 %s116, 1
        %s1293 = scalar_lea.sflag [#allocation7], %s1292
        %s1294 = sand.u32 %s116, 1
        %s1295 = smul.addr %s1294, 32
        %s1296 = scalar_lea.vmem [#allocation8], %s1295
        // Predicated region
        $region45: #{tpu_custom_call.1} parent=35 // pred_check
          %p1297 = pneg %p126
        $region46: #{tpu_custom_call.1} parent=35 // pred_check_branch
          %1299 = sbr.rel (%p1297) target = $region48
        $region47: #{tpu_custom_call.1} parent=35 // pred_region
          %s1300 = smul.u32 4, %s19
          %1302 = vsyncadd %s1293, 0
          %s1303 = smul.addr %s1300, 8
          %s1304 = scalar_lea.hbm %s4, %s1303
          %s1305 = sshll.u32 %s1296, 4
          %s1306 = int_to_ptr.vmem [resolvable:$true] %s1305
          %s1307 = sshll.u32 %s1304, 4
          %s1308 = int_to_ptr.hbm [resolvable:$true] %s1307
          %1313 = dma.vmem_to_hbm [thread:$0]  %s1306, 512, %s1308, %s1293, 128, 128, 8
        $region48: #{tpu_custom_call.1} parent=35 // pred_fallthru
          _
      $region36: #{tpu_custom_call.1} parent=5 // pred_fallthru
        _
      %p1314 = scmp.le.s32.totalorder 2, %s14
      // Predicated region
      $region49: #{tpu_custom_call.1} parent=5 // pred_check
        %p1315 = pneg %p1314
      $region50: #{tpu_custom_call.1} parent=5 // pred_check_branch
        %1317 = sbr.rel (%p1315) target = $region52
      $region51: #{tpu_custom_call.1} parent=5 // pred_region
        %s1318 = ssub.s32 %s14, 2
        // Predicated region
        $region53: #{tpu_custom_call.1} parent=51 // pred_check
          %p1319 = pneg %p132
        $region54: #{tpu_custom_call.1} parent=51 // pred_check_branch
          %1321 = sbr.rel (%p1319) target = $region56
        $region55: #{tpu_custom_call.1} parent=51 // pred_region
          %s1322 = sand.u32 %s117, 1
          %s1323 = scalar_lea.sflag [#allocation7], %s1322
          %s1324 = sand.u32 %s117, 1
          %s1325 = smul.addr %s1324, 32
          %s1326 = scalar_lea.vmem [#allocation8], %s1325
          %1328 = dma.done %s1323, 512
        $region56: #{tpu_custom_call.1} parent=51 // pred_fallthru
          _
      $region52: #{tpu_custom_call.1} parent=5 // pred_fallthru
        _
    $region6: #{tpu_custom_call.1} parent=1 // loop_footer
      %s18 = sadd.s32 1, %s14
    $region7: #{tpu_custom_call.1} parent=1 // loop_footer_branch
      %13 = sbr.rel target = $region3
    $region8: #{tpu_custom_call.1} parent=1 // loop_exit
      _
    %1329 = vsyncpa [#allocation6], 1
    %s1330 = scalar_lea.sflag [#allocation6], 1
    %1331 = vsyncpa %s1330, 1
    %1332 = vsyncpa [#allocation7], 1
    %s1333 = scalar_lea.sflag [#allocation7], 1
    %1334 = vsyncpa %s1333, 1

</llo_original>
